<compile_context>
chip_gen: v7x
topology: tpu7x:2x2x1
jax: 0.10.0
libtpu: 0.0.40
codegen_flags: <defaults>
</compile_context>

<pallas_src>
import functools

import jax
import jax.numpy as jnp
from jax.experimental import pallas as pl
from jax.experimental.pallas import tpu as pltpu

# Above the default scoped limit on all chips, below v7x's 64 MiB physical.
_VMEM_LIMIT = 48 * 1024 * 1024


# ----------------------------------------------------------------------------
# Kernel 1: folded multi-scale depthwise conv mix
#   out = a0*x + a1*conv1x1(x) + a2*conv3x3(x) + a3*conv5x5(x)
#       = depthwise_conv5x5(x, w_eff)   with w_eff pre-folded in the wrapper
# ----------------------------------------------------------------------------
def _conv_mix_kernel(x_ref, w_ref, o_ref, xs_ref):
    # x_ref:  (H, W, Ct)        one batch element, one channel tile (NHWC)
    # w_ref:  (25, Ct)          folded effective 5x5 depthwise weights, tap-major
    # o_ref:  (H, W, Ct)
    # xs_ref: (5, H+4, W, Ct)   scratch: 5 W-shifted, zero-padded copies of x
    H, W, Ct = x_ref.shape
    x = x_ref[...]

    # Every grid step rebuilds the whole scratch (thin zero halo + shifted
    # interior), so correctness never depends on scratch persistence or on
    # how a "parallel" axis is split across TensorCores.  Halo rows are
    # outer-dim slices -> cheap stores (no full-array clear).
    xs_ref[:, 0:2, :, :] = jnp.zeros((5, 2, W, Ct), xs_ref.dtype)
    xs_ref[:, H + 2:H + 4, :, :] = jnp.zeros((5, 2, W, Ct), xs_ref.dtype)

    # Pre-shift along W (the sublane axis) once per dj: 5 unaligned sublane
    # slices here instead of 25 inside the tap loop below.
    for dj in range(5):
        j_lo = max(0, 2 - dj)            # destination columns [j_lo, j_hi)
        j_hi = W - max(0, dj - 2)
        s_lo = max(0, dj - 2)            # source columns      [s_lo, s_hi)
        s_hi = W - max(0, 2 - dj)
        if j_lo > 0:                     # left zero halo (W padding)
            xs_ref[dj, 2:2 + H, 0:j_lo, :] = jnp.zeros((H, j_lo, Ct),
                                                       xs_ref.dtype)
        if j_hi < W:                     # right zero halo (W padding)
            xs_ref[dj, 2:2 + H, j_hi:W, :] = jnp.zeros((H, W - j_hi, Ct),
                                                       xs_ref.dtype)
        if j_hi > j_lo:
            xs_ref[dj, 2:2 + H, j_lo:j_hi, :] = x[:, s_lo:s_hi, :]

    # Single 25-tap accumulation with pre-folded weights; all tap slices
    # offset only the two outer (aligned) dims of xs_ref.
    acc = jnp.zeros((H, W, Ct), jnp.float32)
    for di in range(5):
        for dj in range(5):
            tap = xs_ref[dj, di:di + H, :, :]                 # (H, W, Ct)
            acc = acc + tap.astype(jnp.float32) * w_ref[di * 5 + dj, :]
    o_ref[...] = acc.astype(o_ref.dtype)


def _pick_channel_tile(C):
    # Bound per-step accumulator / scratch size and add a second parallel
    # grid axis; fall back to full C when it is not 128-lane aligned.
    if C % 128 == 0:
        for tc in (256, 128):
            if C % tc == 0:
                return tc
    return C


def _multi_scale_conv(x_img, w_eff):
    B, H, W, C = x_img.shape
    tc = _pick_channel_tile(C)
    return pl.pallas_call(
        _conv_mix_kernel,
        out_shape=jax.ShapeDtypeStruct((B, H, W, C), x_img.dtype),
        grid=(B, C // tc),
        in_specs=[
            pl.BlockSpec((None, H, W, tc), lambda b, c: (b, 0, 0, c)),
            pl.BlockSpec((25, tc), lambda b, c: (0, c)),
        ],
        out_specs=pl.BlockSpec((None, H, W, tc), lambda b, c: (b, 0, 0, c)),
        scratch_shapes=[pltpu.VMEM((5, H + 4, W, tc), x_img.dtype)],
        compiler_params=pltpu.CompilerParams(
            dimension_semantics=("parallel", "parallel"),
            vmem_limit_bytes=_VMEM_LIMIT),
    )(x_img, w_eff)


def _fold_conv_weights(alpha, w1, w3, w5):
    # w1: (1, C), w3: (9, C), w5: (25, C) tap-major depthwise weights
    # (row-major within each k x k window).  Returns (25, C):
    #   w_eff = a3*w5  (+ a2*w3 on the inner 3x3 taps)  (+ a0 + a1*w1 at center)
    w_eff = alpha[3] * w5.astype(jnp.float32)
    inner_idx = jnp.array([di * 5 + dj for di in (1, 2, 3) for dj in (1, 2, 3)],
                          dtype=jnp.int32)
    w_eff = w_eff.at[inner_idx].add(alpha[2] * w3.astype(jnp.float32))
    w_eff = w_eff.at[12].add(alpha[0] + alpha[1] * w1[0].astype(jnp.float32))
    return w_eff


# ----------------------------------------------------------------------------
# Kernel 2: channel-mix MLP
#   kr  = x @ [Wk | Wr]            (single MXU pass for both x-projections)
#   k   = relu(kr[:, :Hd])^2
#   out = sigmoid(kr[:, Hd:]) * (k @ Wv)
# ----------------------------------------------------------------------------
def _channel_mix_kernel(x_ref, wkr_ref, wv_ref, o_ref, *, hidden):
    x = x_ref[...]                                              # (tm, C)
    kr = jnp.dot(x, wkr_ref[...], preferred_element_type=jnp.float32)
    k = jnp.square(jnp.maximum(kr[:, :hidden], 0.0))            # relu(k)^2
    r = jax.nn.sigmoid(kr[:, hidden:])
    # TODO(synk): key_norm branch (LayerNorm over hidden) not implemented;
    #             the module default key_norm=False so it is unused here.
    kv = jnp.dot(k.astype(wv_ref.dtype), wv_ref[...],
                 preferred_element_type=jnp.float32)
    o_ref[...] = (r * kv).astype(o_ref.dtype)


def _round_up(n, m):
    return ((n + m - 1) // m) * m


def _channel_mix_mlp(x_flat, wkr, wv, hidden, tm=256):
    N, C = x_flat.shape
    tm = _round_up(max(8, min(tm, N)), 8)     # multiple of 8, not above need
    n_pad = (-N) % tm
    if n_pad:                                  # ragged B*T: pad, then slice
        x_flat = jnp.pad(x_flat, ((0, n_pad), (0, 0)))
    Np = N + n_pad
    out = pl.pallas_call(
        functools.partial(_channel_mix_kernel, hidden=hidden),
        out_shape=jax.ShapeDtypeStruct((Np, C), x_flat.dtype),
        grid=(Np // tm,),
        in_specs=[
            pl.BlockSpec((tm, C), lambda i: (i, 0)),
            pl.BlockSpec(wkr.shape, lambda i: (0, 0)),
            pl.BlockSpec(wv.shape, lambda i: (0, 0)),
        ],
        out_specs=pl.BlockSpec((tm, C), lambda i: (i, 0)),
        compiler_params=pltpu.CompilerParams(
            dimension_semantics=("parallel",),
            vmem_limit_bytes=_VMEM_LIMIT),
    )(x_flat, wkr, wv)
    return out[:N] if n_pad else out


# ----------------------------------------------------------------------------
# Full forward (glue in plain JAX)
# ----------------------------------------------------------------------------
def vrwkv_channel_mix(x, patch_resolution, alpha, w1, w3, w5, wk, wv, wr,
                      *, matmul_dtype=None, tm=256):
    """VRWKV_ChannelMix forward.

    x: (B, T, C), patch_resolution: (H, W) with H*W == T.
    alpha: (4,).  w1/w3/w5: (1,C)/(9,C)/(25,C) tap-major depthwise weights.
    wk: (C, Hd) = key.weight.T, wv: (Hd, C), wr: (C, C).
    matmul_dtype: MLP matmul operand dtype (e.g. jnp.bfloat16 on v6e/v7x);
                  defaults to x.dtype.
    """
    B, T, C = x.shape
    H, W = patch_resolution
    assert T == H * W, "patch_resolution mismatch"
    hidden = wk.shape[1]

    # multi-scale depthwise conv mix, folded into a single 5x5 depthwise conv
    w_eff = _fold_conv_weights(alpha, w1, w3, w5)
    mixed = _multi_scale_conv(x.reshape(B, H, W, C), w_eff)

    # channel-mix MLP (xk == xr == mixed, exactly as in the reference module)
    dt = x.dtype if matmul_dtype is None else matmul_dtype
    wkr = jnp.concatenate([wk, wr], axis=1).astype(dt)
    x_seq = mixed.reshape(B * T, C).astype(dt)
    out = _channel_mix_mlp(x_seq, wkr, wv.astype(dt), hidden, tm=tm)
    return out.reshape(B, T, C).astype(x.dtype)


# ----------------------------------------------------------------------------
# Reference (plain JAX) for a sanity check
# ----------------------------------------------------------------------------
def _reference(x, patch_resolution, alpha, w1, w3, w5, wk, wv, wr):
    B, T, C = x.shape
    H, W = patch_resolution
    x_nchw = jnp.transpose(x.reshape(B, H, W, C), (0, 3, 1, 2))

    def dwconv(inp, w_flat, k):
        w = jnp.transpose(w_flat, (1, 0)).reshape(C, 1, k, k)   # OIHW, I=1
        return jax.lax.conv_general_dilated(
            inp, w, window_strides=(1, 1), padding="SAME",
            feature_group_count=C,
            dimension_numbers=("NCHW", "OIHW", "NCHW"))

    o1 = dwconv(x_nchw, w1, 1)
    o3 = dwconv(x_nchw, w3, 3)
    o5 = dwconv(x_nchw, w5, 5)
    out = alpha[0] * x_nchw + alpha[1] * o1 + alpha[2] * o3 + alpha[3] * o5
    xs = jnp.transpose(out, (0, 2, 3, 1)).reshape(B, T, C)
    k = jnp.square(jnp.maximum(xs @ wk, 0.0))
    kv = k @ wv
    return jax.nn.sigmoid(xs @ wr) * kv


if __name__ == "__main__":
    B, H, W = 2, 8, 8
    n_embd = 32
    hidden = 4 * n_embd          # hidden_rate = 4
    T = H * W

    key = jax.random.PRNGKey(0)
    ks = jax.random.split(key, 8)
    x = jax.random.normal(ks[0], (B, T, n_embd), jnp.float32)

    # deterministic synthetic parameters (shapes from the module's __init__)
    alpha = jax.random.normal(ks[1], (4,), jnp.float32)                  # alpha (4,)
    w1 = jax.random.normal(ks[2], (1, n_embd), jnp.float32) * 0.1        # conv1x1 [C,1,1,1] tap-major
    w3 = jax.random.normal(ks[3], (9, n_embd), jnp.float32) * 0.1        # conv3x3 [C,1,3,3] tap-major
    w5 = jax.random.normal(ks[4], (25, n_embd), jnp.float32) * 0.1       # conv5x5 [C,1,5,5] tap-major
    wk = jax.random.normal(ks[5], (n_embd, hidden), jnp.float32) * 0.02  # key.weight^T
    wv = jax.random.normal(ks[6], (hidden, n_embd), jnp.float32) * 0.02  # value.weight^T
    wr = jax.random.normal(ks[7], (n_embd, n_embd), jnp.float32) * 0.02  # receptance.weight^T

    out = jax.block_until_ready(
        vrwkv_channel_mix(x, (H, W), alpha, w1, w3, w5, wk, wv, wr))

    ref = _reference(x, (H, W), alpha, w1, w3, w5, wk, wv, wr)
    assert out.shape == (B, T, n_embd)
    assert jnp.allclose(out, ref, rtol=1e-2, atol=1e-2), "mismatch vs reference"

    print("KERNEL_OK")
</pallas_src>

<mosaic_0001>
module attributes {stable_mosaic.version = 11 : i64} {
  func.func @_conv_mix_kernel(%arg0: i32, %arg1: i32, %arg2: memref<1x8x8x32xf32, #tpu.memory_space<vmem>>, %arg3: memref<25x32xf32, #tpu.memory_space<vmem>>, %arg4: memref<1x8x8x32xf32, #tpu.memory_space<vmem>>, %arg5: memref<5x12x8x32xf32, #tpu.memory_space<vmem>>) attributes {dimension_semantics = [#tpu.dimension_semantics<parallel>, #tpu.dimension_semantics<parallel>], iteration_bounds = array<i64: 2, 1>, scalar_prefetch = 0 : i64, scratch_operands = 1 : i64, tpu.core_type = #tpu.core_type<tc>, window_params = [{transform_indices = @transform_0, window_bounds = array<i64: 1, 8, 8, 32>}, {transform_indices = @transform_1, window_bounds = array<i64: 25, 32>}, {transform_indices = @transform_2, window_bounds = array<i64: 1, 8, 8, 32>}]} {
    %c0 = arith.constant 0 : index
    %c0_0 = arith.constant 0 : index
    %c0_1 = arith.constant 0 : index
    %c0_2 = arith.constant 0 : index
    %0 = vector.load %arg2[%c0, %c0_0, %c0_1, %c0_2] : memref<1x8x8x32xf32, #tpu.memory_space<vmem>>, vector<1x8x8x32xf32>
    %1 = vector.shape_cast %0 : vector<1x8x8x32xf32> to vector<8x8x32xf32>
    %cst = arith.constant 0.000000e+00 : f32
    %2 = vector.broadcast %cst : f32 to vector<5x2x8x32xf32>
    %c0_3 = arith.constant 0 : index
    %c0_4 = arith.constant 0 : index
    %c0_5 = arith.constant 0 : index
    %c0_6 = arith.constant 0 : index
    %3 = vector.load %arg5[%c0_3, %c0_4, %c0_5, %c0_6] : memref<5x12x8x32xf32, #tpu.memory_space<vmem>>, vector<5x2x8x32xf32>
    tpu.vector_store %arg5[%c0_3, %c0_4, %c0_5, %c0_6], %2 {strides = array<i32>} : memref<5x12x8x32xf32, #tpu.memory_space<vmem>>, vector<5x2x8x32xf32>,
    %cst_7 = arith.constant 0.000000e+00 : f32
    %4 = vector.broadcast %cst_7 : f32 to vector<5x2x8x32xf32>
    %c0_8 = arith.constant 0 : index
    %c10 = arith.constant 10 : index
    %c0_9 = arith.constant 0 : index
    %c0_10 = arith.constant 0 : index
    %5 = vector.load %arg5[%c0_8, %c10, %c0_9, %c0_10] : memref<5x12x8x32xf32, #tpu.memory_space<vmem>>, vector<5x2x8x32xf32>
    tpu.vector_store %arg5[%c0_8, %c10, %c0_9, %c0_10], %4 {strides = array<i32>} : memref<5x12x8x32xf32, #tpu.memory_space<vmem>>, vector<5x2x8x32xf32>,
    %cst_11 = arith.constant 0.000000e+00 : f32
    %6 = vector.broadcast %cst_11 : f32 to vector<8x2x32xf32>
    %c0_12 = arith.constant 0 : index
    %c2 = arith.constant 2 : index
    %c0_13 = arith.constant 0 : index
    %c0_14 = arith.constant 0 : index
    %7 = vector.load %arg5[%c0_12, %c2, %c0_13, %c0_14] : memref<5x12x8x32xf32, #tpu.memory_space<vmem>>, vector<1x8x2x32xf32>
    %8 = vector.shape_cast %7 : vector<1x8x2x32xf32> to vector<8x2x32xf32>
    %9 = vector.shape_cast %6 : vector<8x2x32xf32> to vector<1x8x2x32xf32>
    tpu.vector_store %arg5[%c0_12, %c2, %c0_13, %c0_14], %9 {strides = array<i32>} : memref<5x12x8x32xf32, #tpu.memory_space<vmem>>, vector<1x8x2x32xf32>,
    %10 = vector.extract_strided_slice %1 {offsets = [0, 0, 0], sizes = [8, 6, 32], strides = [1, 1, 1]} : vector<8x8x32xf32> to vector<8x6x32xf32>
    %c0_15 = arith.constant 0 : index
    %c2_16 = arith.constant 2 : index
    %c2_17 = arith.constant 2 : index
    %c0_18 = arith.constant 0 : index
    %11 = vector.load %arg5[%c0_15, %c2_16, %c2_17, %c0_18] : memref<5x12x8x32xf32, #tpu.memory_space<vmem>>, vector<1x8x6x32xf32>
    %12 = vector.shape_cast %11 : vector<1x8x6x32xf32> to vector<8x6x32xf32>
    %13 = vector.shape_cast %10 : vector<8x6x32xf32> to vector<1x8x6x32xf32>
    tpu.vector_store %arg5[%c0_15, %c2_16, %c2_17, %c0_18], %13 {strides = array<i32>} : memref<5x12x8x32xf32, #tpu.memory_space<vmem>>, vector<1x8x6x32xf32>,
    %cst_19 = arith.constant 0.000000e+00 : f32
    %14 = vector.broadcast %cst_19 : f32 to vector<8x1x32xf32>
    %c1 = arith.constant 1 : index
    %c2_20 = arith.constant 2 : index
    %c0_21 = arith.constant 0 : index
    %c0_22 = arith.constant 0 : index
    %15 = vector.load %arg5[%c1, %c2_20, %c0_21, %c0_22] : memref<5x12x8x32xf32, #tpu.memory_space<vmem>>, vector<1x8x1x32xf32>
    %16 = vector.shape_cast %15 : vector<1x8x1x32xf32> to vector<8x1x32xf32>
    %17 = vector.shape_cast %14 : vector<8x1x32xf32> to vector<1x8x1x32xf32>
    tpu.vector_store %arg5[%c1, %c2_20, %c0_21, %c0_22], %17 {strides = array<i32>} : memref<5x12x8x32xf32, #tpu.memory_space<vmem>>, vector<1x8x1x32xf32>,
    %18 = vector.extract_strided_slice %1 {offsets = [0, 0, 0], sizes = [8, 7, 32], strides = [1, 1, 1]} : vector<8x8x32xf32> to vector<8x7x32xf32>
    %c1_23 = arith.constant 1 : index
    %c2_24 = arith.constant 2 : index
    %c1_25 = arith.constant 1 : index
    %c0_26 = arith.constant 0 : index
    %19 = vector.load %arg5[%c1_23, %c2_24, %c1_25, %c0_26] : memref<5x12x8x32xf32, #tpu.memory_space<vmem>>, vector<1x8x7x32xf32>
    %20 = vector.shape_cast %19 : vector<1x8x7x32xf32> to vector<8x7x32xf32>
    %21 = vector.shape_cast %18 : vector<8x7x32xf32> to vector<1x8x7x32xf32>
    tpu.vector_store %arg5[%c1_23, %c2_24, %c1_25, %c0_26], %21 {strides = array<i32>} : memref<5x12x8x32xf32, #tpu.memory_space<vmem>>, vector<1x8x7x32xf32>,
    %c2_27 = arith.constant 2 : index
    %c2_28 = arith.constant 2 : index
    %c0_29 = arith.constant 0 : index
    %c0_30 = arith.constant 0 : index
    %22 = vector.load %arg5[%c2_27, %c2_28, %c0_29, %c0_30] : memref<5x12x8x32xf32, #tpu.memory_space<vmem>>, vector<1x8x8x32xf32>
    %23 = vector.shape_cast %22 : vector<1x8x8x32xf32> to vector<8x8x32xf32>
    %24 = vector.shape_cast %1 : vector<8x8x32xf32> to vector<1x8x8x32xf32>
    tpu.vector_store %arg5[%c2_27, %c2_28, %c0_29, %c0_30], %24 {strides = array<i32>} : memref<5x12x8x32xf32, #tpu.memory_space<vmem>>, vector<1x8x8x32xf32>,
    %cst_31 = arith.constant 0.000000e+00 : f32
    %25 = vector.broadcast %cst_31 : f32 to vector<8x1x32xf32>
    %c3 = arith.constant 3 : index
    %c2_32 = arith.constant 2 : index
    %c7 = arith.constant 7 : index
    %c0_33 = arith.constant 0 : index
    %26 = vector.load %arg5[%c3, %c2_32, %c7, %c0_33] : memref<5x12x8x32xf32, #tpu.memory_space<vmem>>, vector<1x8x1x32xf32>
    %27 = vector.shape_cast %26 : vector<1x8x1x32xf32> to vector<8x1x32xf32>
    %28 = vector.shape_cast %25 : vector<8x1x32xf32> to vector<1x8x1x32xf32>
    tpu.vector_store %arg5[%c3, %c2_32, %c7, %c0_33], %28 {strides = array<i32>} : memref<5x12x8x32xf32, #tpu.memory_space<vmem>>, vector<1x8x1x32xf32>,
    %29 = vector.extract_strided_slice %1 {offsets = [0, 1, 0], sizes = [8, 7, 32], strides = [1, 1, 1]} : vector<8x8x32xf32> to vector<8x7x32xf32>
    %c3_34 = arith.constant 3 : index
    %c2_35 = arith.constant 2 : index
    %c0_36 = arith.constant 0 : index
    %c0_37 = arith.constant 0 : index
    %30 = vector.load %arg5[%c3_34, %c2_35, %c0_36, %c0_37] : memref<5x12x8x32xf32, #tpu.memory_space<vmem>>, vector<1x8x7x32xf32>
    %31 = vector.shape_cast %30 : vector<1x8x7x32xf32> to vector<8x7x32xf32>
    %32 = vector.shape_cast %29 : vector<8x7x32xf32> to vector<1x8x7x32xf32>
    tpu.vector_store %arg5[%c3_34, %c2_35, %c0_36, %c0_37], %32 {strides = array<i32>} : memref<5x12x8x32xf32, #tpu.memory_space<vmem>>, vector<1x8x7x32xf32>,
    %cst_38 = arith.constant 0.000000e+00 : f32
    %33 = vector.broadcast %cst_38 : f32 to vector<8x2x32xf32>
    %c4 = arith.constant 4 : index
    %c2_39 = arith.constant 2 : index
    %c6 = arith.constant 6 : index
    %c0_40 = arith.constant 0 : index
    %34 = vector.load %arg5[%c4, %c2_39, %c6, %c0_40] : memref<5x12x8x32xf32, #tpu.memory_space<vmem>>, vector<1x8x2x32xf32>
    %35 = vector.shape_cast %34 : vector<1x8x2x32xf32> to vector<8x2x32xf32>
    %36 = vector.shape_cast %33 : vector<8x2x32xf32> to vector<1x8x2x32xf32>
    tpu.vector_store %arg5[%c4, %c2_39, %c6, %c0_40], %36 {strides = array<i32>} : memref<5x12x8x32xf32, #tpu.memory_space<vmem>>, vector<1x8x2x32xf32>,
    %37 = vector.extract_strided_slice %1 {offsets = [0, 2, 0], sizes = [8, 6, 32], strides = [1, 1, 1]} : vector<8x8x32xf32> to vector<8x6x32xf32>
    %c4_41 = arith.constant 4 : index
    %c2_42 = arith.constant 2 : index
    %c0_43 = arith.constant 0 : index
    %c0_44 = arith.constant 0 : index
    %38 = vector.load %arg5[%c4_41, %c2_42, %c0_43, %c0_44] : memref<5x12x8x32xf32, #tpu.memory_space<vmem>>, vector<1x8x6x32xf32>
    %39 = vector.shape_cast %38 : vector<1x8x6x32xf32> to vector<8x6x32xf32>
    %40 = vector.shape_cast %37 : vector<8x6x32xf32> to vector<1x8x6x32xf32>
    tpu.vector_store %arg5[%c4_41, %c2_42, %c0_43, %c0_44], %40 {strides = array<i32>} : memref<5x12x8x32xf32, #tpu.memory_space<vmem>>, vector<1x8x6x32xf32>,
    %cst_45 = arith.constant 0.000000e+00 : f32
    %41 = vector.broadcast %cst_45 : f32 to vector<8x8x32xf32>
    %c0_46 = arith.constant 0 : index
    %c0_47 = arith.constant 0 : index
    %c0_48 = arith.constant 0 : index
    %c0_49 = arith.constant 0 : index
    %42 = vector.load %arg5[%c0_46, %c0_47, %c0_48, %c0_49] : memref<5x12x8x32xf32, #tpu.memory_space<vmem>>, vector<1x8x8x32xf32>
    %43 = vector.shape_cast %42 : vector<1x8x8x32xf32> to vector<8x8x32xf32>
    %c0_50 = arith.constant 0 : index
    %c0_51 = arith.constant 0 : index
    %44 = vector.load %arg3[%c0_50, %c0_51] : memref<25x32xf32, #tpu.memory_space<vmem>>, vector<1x32xf32>
    %45 = vector.shape_cast %44 : vector<1x32xf32> to vector<32xf32>
    %46 = vector.shape_cast %45 : vector<32xf32> to vector<1x1x32xf32>
    %47 = vector.broadcast %46 : vector<1x1x32xf32> to vector<8x8x32xf32>
    %48 = arith.mulf %43, %47 : vector<8x8x32xf32>
    %49 = arith.addf %41, %48 : vector<8x8x32xf32>
    %c1_52 = arith.constant 1 : index
    %c0_53 = arith.constant 0 : index
    %c0_54 = arith.constant 0 : index
    %c0_55 = arith.constant 0 : index
    %50 = vector.load %arg5[%c1_52, %c0_53, %c0_54, %c0_55] : memref<5x12x8x32xf32, #tpu.memory_space<vmem>>, vector<1x8x8x32xf32>
    %51 = vector.shape_cast %50 : vector<1x8x8x32xf32> to vector<8x8x32xf32>
    %c1_56 = arith.constant 1 : index
    %c0_57 = arith.constant 0 : index
    %52 = vector.load %arg3[%c1_56, %c0_57] : memref<25x32xf32, #tpu.memory_space<vmem>>, vector<1x32xf32>
    %53 = vector.shape_cast %52 : vector<1x32xf32> to vector<32xf32>
    %54 = vector.shape_cast %53 : vector<32xf32> to vector<1x1x32xf32>
    %55 = vector.broadcast %54 : vector<1x1x32xf32> to vector<8x8x32xf32>
    %56 = arith.mulf %51, %55 : vector<8x8x32xf32>
    %57 = arith.addf %49, %56 : vector<8x8x32xf32>
    %c2_58 = arith.constant 2 : index
    %c0_59 = arith.constant 0 : index
    %c0_60 = arith.constant 0 : index
    %c0_61 = arith.constant 0 : index
    %58 = vector.load %arg5[%c2_58, %c0_59, %c0_60, %c0_61] : memref<5x12x8x32xf32, #tpu.memory_space<vmem>>, vector<1x8x8x32xf32>
    %59 = vector.shape_cast %58 : vector<1x8x8x32xf32> to vector<8x8x32xf32>
    %c2_62 = arith.constant 2 : index
    %c0_63 = arith.constant 0 : index
    %60 = vector.load %arg3[%c2_62, %c0_63] : memref<25x32xf32, #tpu.memory_space<vmem>>, vector<1x32xf32>
    %61 = vector.shape_cast %60 : vector<1x32xf32> to vector<32xf32>
    %62 = vector.shape_cast %61 : vector<32xf32> to vector<1x1x32xf32>
    %63 = vector.broadcast %62 : vector<1x1x32xf32> to vector<8x8x32xf32>
    %64 = arith.mulf %59, %63 : vector<8x8x32xf32>
    %65 = arith.addf %57, %64 : vector<8x8x32xf32>
    %c3_64 = arith.constant 3 : index
    %c0_65 = arith.constant 0 : index
    %c0_66 = arith.constant 0 : index
    %c0_67 = arith.constant 0 : index
    %66 = vector.load %arg5[%c3_64, %c0_65, %c0_66, %c0_67] : memref<5x12x8x32xf32, #tpu.memory_space<vmem>>, vector<1x8x8x32xf32>
    %67 = vector.shape_cast %66 : vector<1x8x8x32xf32> to vector<8x8x32xf32>
    %c3_68 = arith.constant 3 : index
    %c0_69 = arith.constant 0 : index
    %68 = vector.load %arg3[%c3_68, %c0_69] : memref<25x32xf32, #tpu.memory_space<vmem>>, vector<1x32xf32>
    %69 = vector.shape_cast %68 : vector<1x32xf32> to vector<32xf32>
    %70 = vector.shape_cast %69 : vector<32xf32> to vector<1x1x32xf32>
    %71 = vector.broadcast %70 : vector<1x1x32xf32> to vector<8x8x32xf32>
    %72 = arith.mulf %67, %71 : vector<8x8x32xf32>
    %73 = arith.addf %65, %72 : vector<8x8x32xf32>
    %c4_70 = arith.constant 4 : index
    %c0_71 = arith.constant 0 : index
    %c0_72 = arith.constant 0 : index
    %c0_73 = arith.constant 0 : index
    %74 = vector.load %arg5[%c4_70, %c0_71, %c0_72, %c0_73] : memref<5x12x8x32xf32, #tpu.memory_space<vmem>>, vector<1x8x8x32xf32>
    %75 = vector.shape_cast %74 : vector<1x8x8x32xf32> to vector<8x8x32xf32>
    %c4_74 = arith.constant 4 : index
    %c0_75 = arith.constant 0 : index
    %76 = vector.load %arg3[%c4_74, %c0_75] : memref<25x32xf32, #tpu.memory_space<vmem>>, vector<1x32xf32>
    %77 = vector.shape_cast %76 : vector<1x32xf32> to vector<32xf32>
    %78 = vector.shape_cast %77 : vector<32xf32> to vector<1x1x32xf32>
    %79 = vector.broadcast %78 : vector<1x1x32xf32> to vector<8x8x32xf32>
    %80 = arith.mulf %75, %79 : vector<8x8x32xf32>
    %81 = arith.addf %73, %80 : vector<8x8x32xf32>
    %c0_76 = arith.constant 0 : index
    %c1_77 = arith.constant 1 : index
    %c0_78 = arith.constant 0 : index
    %c0_79 = arith.constant 0 : index
    %82 = vector.load %arg5[%c0_76, %c1_77, %c0_78, %c0_79] : memref<5x12x8x32xf32, #tpu.memory_space<vmem>>, vector<1x8x8x32xf32>
    %83 = vector.shape_cast %82 : vector<1x8x8x32xf32> to vector<8x8x32xf32>
    %c5 = arith.constant 5 : index
    %c0_80 = arith.constant 0 : index
    %84 = vector.load %arg3[%c5, %c0_80] : memref<25x32xf32, #tpu.memory_space<vmem>>, vector<1x32xf32>
    %85 = vector.shape_cast %84 : vector<1x32xf32> to vector<32xf32>
    %86 = vector.shape_cast %85 : vector<32xf32> to vector<1x1x32xf32>
    %87 = vector.broadcast %86 : vector<1x1x32xf32> to vector<8x8x32xf32>
    %88 = arith.mulf %83, %87 : vector<8x8x32xf32>
    %89 = arith.addf %81, %88 : vector<8x8x32xf32>
    %c1_81 = arith.constant 1 : index
    %c1_82 = arith.constant 1 : index
    %c0_83 = arith.constant 0 : index
    %c0_84 = arith.constant 0 : index
    %90 = vector.load %arg5[%c1_81, %c1_82, %c0_83, %c0_84] : memref<5x12x8x32xf32, #tpu.memory_space<vmem>>, vector<1x8x8x32xf32>
    %91 = vector.shape_cast %90 : vector<1x8x8x32xf32> to vector<8x8x32xf32>
    %c6_85 = arith.constant 6 : index
    %c0_86 = arith.constant 0 : index
    %92 = vector.load %arg3[%c6_85, %c0_86] : memref<25x32xf32, #tpu.memory_space<vmem>>, vector<1x32xf32>
    %93 = vector.shape_cast %92 : vector<1x32xf32> to vector<32xf32>
    %94 = vector.shape_cast %93 : vector<32xf32> to vector<1x1x32xf32>
    %95 = vector.broadcast %94 : vector<1x1x32xf32> to vector<8x8x32xf32>
    %96 = arith.mulf %91, %95 : vector<8x8x32xf32>
    %97 = arith.addf %89, %96 : vector<8x8x32xf32>
    %c2_87 = arith.constant 2 : index
    %c1_88 = arith.constant 1 : index
    %c0_89 = arith.constant 0 : index
    %c0_90 = arith.constant 0 : index
    %98 = vector.load %arg5[%c2_87, %c1_88, %c0_89, %c0_90] : memref<5x12x8x32xf32, #tpu.memory_space<vmem>>, vector<1x8x8x32xf32>
    %99 = vector.shape_cast %98 : vector<1x8x8x32xf32> to vector<8x8x32xf32>
    %c7_91 = arith.constant 7 : index
    %c0_92 = arith.constant 0 : index
    %100 = vector.load %arg3[%c7_91, %c0_92] : memref<25x32xf32, #tpu.memory_space<vmem>>, vector<1x32xf32>
    %101 = vector.shape_cast %100 : vector<1x32xf32> to vector<32xf32>
    %102 = vector.shape_cast %101 : vector<32xf32> to vector<1x1x32xf32>
    %103 = vector.broadcast %102 : vector<1x1x32xf32> to vector<8x8x32xf32>
    %104 = arith.mulf %99, %103 : vector<8x8x32xf32>
    %105 = arith.addf %97, %104 : vector<8x8x32xf32>
    %c3_93 = arith.constant 3 : index
    %c1_94 = arith.constant 1 : index
    %c0_95 = arith.constant 0 : index
    %c0_96 = arith.constant 0 : index
    %106 = vector.load %arg5[%c3_93, %c1_94, %c0_95, %c0_96] : memref<5x12x8x32xf32, #tpu.memory_space<vmem>>, vector<1x8x8x32xf32>
    %107 = vector.shape_cast %106 : vector<1x8x8x32xf32> to vector<8x8x32xf32>
    %c8 = arith.constant 8 : index
    %c0_97 = arith.constant 0 : index
    %108 = vector.load %arg3[%c8, %c0_97] : memref<25x32xf32, #tpu.memory_space<vmem>>, vector<1x32xf32>
    %109 = vector.shape_cast %108 : vector<1x32xf32> to vector<32xf32>
    %110 = vector.shape_cast %109 : vector<32xf32> to vector<1x1x32xf32>
    %111 = vector.broadcast %110 : vector<1x1x32xf32> to vector<8x8x32xf32>
    %112 = arith.mulf %107, %111 : vector<8x8x32xf32>
    %113 = arith.addf %105, %112 : vector<8x8x32xf32>
    %c4_98 = arith.constant 4 : index
    %c1_99 = arith.constant 1 : index
    %c0_100 = arith.constant 0 : index
    %c0_101 = arith.constant 0 : index
    %114 = vector.load %arg5[%c4_98, %c1_99, %c0_100, %c0_101] : memref<5x12x8x32xf32, #tpu.memory_space<vmem>>, vector<1x8x8x32xf32>
    %115 = vector.shape_cast %114 : vector<1x8x8x32xf32> to vector<8x8x32xf32>
    %c9 = arith.constant 9 : index
    %c0_102 = arith.constant 0 : index
    %116 = vector.load %arg3[%c9, %c0_102] : memref<25x32xf32, #tpu.memory_space<vmem>>, vector<1x32xf32>
    %117 = vector.shape_cast %116 : vector<1x32xf32> to vector<32xf32>
    %118 = vector.shape_cast %117 : vector<32xf32> to vector<1x1x32xf32>
    %119 = vector.broadcast %118 : vector<1x1x32xf32> to vector<8x8x32xf32>
    %120 = arith.mulf %115, %119 : vector<8x8x32xf32>
    %121 = arith.addf %113, %120 : vector<8x8x32xf32>
    %c0_103 = arith.constant 0 : index
    %c2_104 = arith.constant 2 : index
    %c0_105 = arith.constant 0 : index
    %c0_106 = arith.constant 0 : index
    %122 = vector.load %arg5[%c0_103, %c2_104, %c0_105, %c0_106] : memref<5x12x8x32xf32, #tpu.memory_space<vmem>>, vector<1x8x8x32xf32>
    %123 = vector.shape_cast %122 : vector<1x8x8x32xf32> to vector<8x8x32xf32>
    %c10_107 = arith.constant 10 : index
    %c0_108 = arith.constant 0 : index
    %124 = vector.load %arg3[%c10_107, %c0_108] : memref<25x32xf32, #tpu.memory_space<vmem>>, vector<1x32xf32>
    %125 = vector.shape_cast %124 : vector<1x32xf32> to vector<32xf32>
    %126 = vector.shape_cast %125 : vector<32xf32> to vector<1x1x32xf32>
    %127 = vector.broadcast %126 : vector<1x1x32xf32> to vector<8x8x32xf32>
    %128 = arith.mulf %123, %127 : vector<8x8x32xf32>
    %129 = arith.addf %121, %128 : vector<8x8x32xf32>
    %c1_109 = arith.constant 1 : index
    %c2_110 = arith.constant 2 : index
    %c0_111 = arith.constant 0 : index
    %c0_112 = arith.constant 0 : index
    %130 = vector.load %arg5[%c1_109, %c2_110, %c0_111, %c0_112] : memref<5x12x8x32xf32, #tpu.memory_space<vmem>>, vector<1x8x8x32xf32>
    %131 = vector.shape_cast %130 : vector<1x8x8x32xf32> to vector<8x8x32xf32>
    %c11 = arith.constant 11 : index
    %c0_113 = arith.constant 0 : index
    %132 = vector.load %arg3[%c11, %c0_113] : memref<25x32xf32, #tpu.memory_space<vmem>>, vector<1x32xf32>
    %133 = vector.shape_cast %132 : vector<1x32xf32> to vector<32xf32>
    %134 = vector.shape_cast %133 : vector<32xf32> to vector<1x1x32xf32>
    %135 = vector.broadcast %134 : vector<1x1x32xf32> to vector<8x8x32xf32>
    %136 = arith.mulf %131, %135 : vector<8x8x32xf32>
    %137 = arith.addf %129, %136 : vector<8x8x32xf32>
    %c2_114 = arith.constant 2 : index
    %c2_115 = arith.constant 2 : index
    %c0_116 = arith.constant 0 : index
    %c0_117 = arith.constant 0 : index
    %138 = vector.load %arg5[%c2_114, %c2_115, %c0_116, %c0_117] : memref<5x12x8x32xf32, #tpu.memory_space<vmem>>, vector<1x8x8x32xf32>
    %139 = vector.shape_cast %138 : vector<1x8x8x32xf32> to vector<8x8x32xf32>
    %c12 = arith.constant 12 : index
    %c0_118 = arith.constant 0 : index
    %140 = vector.load %arg3[%c12, %c0_118] : memref<25x32xf32, #tpu.memory_space<vmem>>, vector<1x32xf32>
    %141 = vector.shape_cast %140 : vector<1x32xf32> to vector<32xf32>
    %142 = vector.shape_cast %141 : vector<32xf32> to vector<1x1x32xf32>
    %143 = vector.broadcast %142 : vector<1x1x32xf32> to vector<8x8x32xf32>
    %144 = arith.mulf %139, %143 : vector<8x8x32xf32>
    %145 = arith.addf %137, %144 : vector<8x8x32xf32>
    %c3_119 = arith.constant 3 : index
    %c2_120 = arith.constant 2 : index
    %c0_121 = arith.constant 0 : index
    %c0_122 = arith.constant 0 : index
    %146 = vector.load %arg5[%c3_119, %c2_120, %c0_121, %c0_122] : memref<5x12x8x32xf32, #tpu.memory_space<vmem>>, vector<1x8x8x32xf32>
    %147 = vector.shape_cast %146 : vector<1x8x8x32xf32> to vector<8x8x32xf32>
    %c13 = arith.constant 13 : index
    %c0_123 = arith.constant 0 : index
    %148 = vector.load %arg3[%c13, %c0_123] : memref<25x32xf32, #tpu.memory_space<vmem>>, vector<1x32xf32>
    %149 = vector.shape_cast %148 : vector<1x32xf32> to vector<32xf32>
    %150 = vector.shape_cast %149 : vector<32xf32> to vector<1x1x32xf32>
    %151 = vector.broadcast %150 : vector<1x1x32xf32> to vector<8x8x32xf32>
    %152 = arith.mulf %147, %151 : vector<8x8x32xf32>
    %153 = arith.addf %145, %152 : vector<8x8x32xf32>
    %c4_124 = arith.constant 4 : index
    %c2_125 = arith.constant 2 : index
    %c0_126 = arith.constant 0 : index
    %c0_127 = arith.constant 0 : index
    %154 = vector.load %arg5[%c4_124, %c2_125, %c0_126, %c0_127] : memref<5x12x8x32xf32, #tpu.memory_space<vmem>>, vector<1x8x8x32xf32>
    %155 = vector.shape_cast %154 : vector<1x8x8x32xf32> to vector<8x8x32xf32>
    %c14 = arith.constant 14 : index
    %c0_128 = arith.constant 0 : index
    %156 = vector.load %arg3[%c14, %c0_128] : memref<25x32xf32, #tpu.memory_space<vmem>>, vector<1x32xf32>
    %157 = vector.shape_cast %156 : vector<1x32xf32> to vector<32xf32>
    %158 = vector.shape_cast %157 : vector<32xf32> to vector<1x1x32xf32>
    %159 = vector.broadcast %158 : vector<1x1x32xf32> to vector<8x8x32xf32>
    %160 = arith.mulf %155, %159 : vector<8x8x32xf32>
    %161 = arith.addf %153, %160 : vector<8x8x32xf32>
    %c0_129 = arith.constant 0 : index
    %c3_130 = arith.constant 3 : index
    %c0_131 = arith.constant 0 : index
    %c0_132 = arith.constant 0 : index
    %162 = vector.load %arg5[%c0_129, %c3_130, %c0_131, %c0_132] : memref<5x12x8x32xf32, #tpu.memory_space<vmem>>, vector<1x8x8x32xf32>
    %163 = vector.shape_cast %162 : vector<1x8x8x32xf32> to vector<8x8x32xf32>
    %c15 = arith.constant 15 : index
    %c0_133 = arith.constant 0 : index
    %164 = vector.load %arg3[%c15, %c0_133] : memref<25x32xf32, #tpu.memory_space<vmem>>, vector<1x32xf32>
    %165 = vector.shape_cast %164 : vector<1x32xf32> to vector<32xf32>
    %166 = vector.shape_cast %165 : vector<32xf32> to vector<1x1x32xf32>
    %167 = vector.broadcast %166 : vector<1x1x32xf32> to vector<8x8x32xf32>
    %168 = arith.mulf %163, %167 : vector<8x8x32xf32>
    %169 = arith.addf %161, %168 : vector<8x8x32xf32>
    %c1_134 = arith.constant 1 : index
    %c3_135 = arith.constant 3 : index
    %c0_136 = arith.constant 0 : index
    %c0_137 = arith.constant 0 : index
    %170 = vector.load %arg5[%c1_134, %c3_135, %c0_136, %c0_137] : memref<5x12x8x32xf32, #tpu.memory_space<vmem>>, vector<1x8x8x32xf32>
    %171 = vector.shape_cast %170 : vector<1x8x8x32xf32> to vector<8x8x32xf32>
    %c16 = arith.constant 16 : index
    %c0_138 = arith.constant 0 : index
    %172 = vector.load %arg3[%c16, %c0_138] : memref<25x32xf32, #tpu.memory_space<vmem>>, vector<1x32xf32>
    %173 = vector.shape_cast %172 : vector<1x32xf32> to vector<32xf32>
    %174 = vector.shape_cast %173 : vector<32xf32> to vector<1x1x32xf32>
    %175 = vector.broadcast %174 : vector<1x1x32xf32> to vector<8x8x32xf32>
    %176 = arith.mulf %171, %175 : vector<8x8x32xf32>
    %177 = arith.addf %169, %176 : vector<8x8x32xf32>
    %c2_139 = arith.constant 2 : index
    %c3_140 = arith.constant 3 : index
    %c0_141 = arith.constant 0 : index
    %c0_142 = arith.constant 0 : index
    %178 = vector.load %arg5[%c2_139, %c3_140, %c0_141, %c0_142] : memref<5x12x8x32xf32, #tpu.memory_space<vmem>>, vector<1x8x8x32xf32>
    %179 = vector.shape_cast %178 : vector<1x8x8x32xf32> to vector<8x8x32xf32>
    %c17 = arith.constant 17 : index
    %c0_143 = arith.constant 0 : index
    %180 = vector.load %arg3[%c17, %c0_143] : memref<25x32xf32, #tpu.memory_space<vmem>>, vector<1x32xf32>
    %181 = vector.shape_cast %180 : vector<1x32xf32> to vector<32xf32>
    %182 = vector.shape_cast %181 : vector<32xf32> to vector<1x1x32xf32>
    %183 = vector.broadcast %182 : vector<1x1x32xf32> to vector<8x8x32xf32>
    %184 = arith.mulf %179, %183 : vector<8x8x32xf32>
    %185 = arith.addf %177, %184 : vector<8x8x32xf32>
    %c3_144 = arith.constant 3 : index
    %c3_145 = arith.constant 3 : index
    %c0_146 = arith.constant 0 : index
    %c0_147 = arith.constant 0 : index
    %186 = vector.load %arg5[%c3_144, %c3_145, %c0_146, %c0_147] : memref<5x12x8x32xf32, #tpu.memory_space<vmem>>, vector<1x8x8x32xf32>
    %187 = vector.shape_cast %186 : vector<1x8x8x32xf32> to vector<8x8x32xf32>
    %c18 = arith.constant 18 : index
    %c0_148 = arith.constant 0 : index
    %188 = vector.load %arg3[%c18, %c0_148] : memref<25x32xf32, #tpu.memory_space<vmem>>, vector<1x32xf32>
    %189 = vector.shape_cast %188 : vector<1x32xf32> to vector<32xf32>
    %190 = vector.shape_cast %189 : vector<32xf32> to vector<1x1x32xf32>
    %191 = vector.broadcast %190 : vector<1x1x32xf32> to vector<8x8x32xf32>
    %192 = arith.mulf %187, %191 : vector<8x8x32xf32>
    %193 = arith.addf %185, %192 : vector<8x8x32xf32>
    %c4_149 = arith.constant 4 : index
    %c3_150 = arith.constant 3 : index
    %c0_151 = arith.constant 0 : index
    %c0_152 = arith.constant 0 : index
    %194 = vector.load %arg5[%c4_149, %c3_150, %c0_151, %c0_152] : memref<5x12x8x32xf32, #tpu.memory_space<vmem>>, vector<1x8x8x32xf32>
    %195 = vector.shape_cast %194 : vector<1x8x8x32xf32> to vector<8x8x32xf32>
    %c19 = arith.constant 19 : index
    %c0_153 = arith.constant 0 : index
    %196 = vector.load %arg3[%c19, %c0_153] : memref<25x32xf32, #tpu.memory_space<vmem>>, vector<1x32xf32>
    %197 = vector.shape_cast %196 : vector<1x32xf32> to vector<32xf32>
    %198 = vector.shape_cast %197 : vector<32xf32> to vector<1x1x32xf32>
    %199 = vector.broadcast %198 : vector<1x1x32xf32> to vector<8x8x32xf32>
    %200 = arith.mulf %195, %199 : vector<8x8x32xf32>
    %201 = arith.addf %193, %200 : vector<8x8x32xf32>
    %c0_154 = arith.constant 0 : index
    %c4_155 = arith.constant 4 : index
    %c0_156 = arith.constant 0 : index
    %c0_157 = arith.constant 0 : index
    %202 = vector.load %arg5[%c0_154, %c4_155, %c0_156, %c0_157] : memref<5x12x8x32xf32, #tpu.memory_space<vmem>>, vector<1x8x8x32xf32>
    %203 = vector.shape_cast %202 : vector<1x8x8x32xf32> to vector<8x8x32xf32>
    %c20 = arith.constant 20 : index
    %c0_158 = arith.constant 0 : index
    %204 = vector.load %arg3[%c20, %c0_158] : memref<25x32xf32, #tpu.memory_space<vmem>>, vector<1x32xf32>
    %205 = vector.shape_cast %204 : vector<1x32xf32> to vector<32xf32>
    %206 = vector.shape_cast %205 : vector<32xf32> to vector<1x1x32xf32>
    %207 = vector.broadcast %206 : vector<1x1x32xf32> to vector<8x8x32xf32>
    %208 = arith.mulf %203, %207 : vector<8x8x32xf32>
    %209 = arith.addf %201, %208 : vector<8x8x32xf32>
    %c1_159 = arith.constant 1 : index
    %c4_160 = arith.constant 4 : index
    %c0_161 = arith.constant 0 : index
    %c0_162 = arith.constant 0 : index
    %210 = vector.load %arg5[%c1_159, %c4_160, %c0_161, %c0_162] : memref<5x12x8x32xf32, #tpu.memory_space<vmem>>, vector<1x8x8x32xf32>
    %211 = vector.shape_cast %210 : vector<1x8x8x32xf32> to vector<8x8x32xf32>
    %c21 = arith.constant 21 : index
    %c0_163 = arith.constant 0 : index
    %212 = vector.load %arg3[%c21, %c0_163] : memref<25x32xf32, #tpu.memory_space<vmem>>, vector<1x32xf32>
    %213 = vector.shape_cast %212 : vector<1x32xf32> to vector<32xf32>
    %214 = vector.shape_cast %213 : vector<32xf32> to vector<1x1x32xf32>
    %215 = vector.broadcast %214 : vector<1x1x32xf32> to vector<8x8x32xf32>
    %216 = arith.mulf %211, %215 : vector<8x8x32xf32>
    %217 = arith.addf %209, %216 : vector<8x8x32xf32>
    %c2_164 = arith.constant 2 : index
    %c4_165 = arith.constant 4 : index
    %c0_166 = arith.constant 0 : index
    %c0_167 = arith.constant 0 : index
    %218 = vector.load %arg5[%c2_164, %c4_165, %c0_166, %c0_167] : memref<5x12x8x32xf32, #tpu.memory_space<vmem>>, vector<1x8x8x32xf32>
    %219 = vector.shape_cast %218 : vector<1x8x8x32xf32> to vector<8x8x32xf32>
    %c22 = arith.constant 22 : index
    %c0_168 = arith.constant 0 : index
    %220 = vector.load %arg3[%c22, %c0_168] : memref<25x32xf32, #tpu.memory_space<vmem>>, vector<1x32xf32>
    %221 = vector.shape_cast %220 : vector<1x32xf32> to vector<32xf32>
    %222 = vector.shape_cast %221 : vector<32xf32> to vector<1x1x32xf32>
    %223 = vector.broadcast %222 : vector<1x1x32xf32> to vector<8x8x32xf32>
    %224 = arith.mulf %219, %223 : vector<8x8x32xf32>
    %225 = arith.addf %217, %224 : vector<8x8x32xf32>
    %c3_169 = arith.constant 3 : index
    %c4_170 = arith.constant 4 : index
    %c0_171 = arith.constant 0 : index
    %c0_172 = arith.constant 0 : index
    %226 = vector.load %arg5[%c3_169, %c4_170, %c0_171, %c0_172] : memref<5x12x8x32xf32, #tpu.memory_space<vmem>>, vector<1x8x8x32xf32>
    %227 = vector.shape_cast %226 : vector<1x8x8x32xf32> to vector<8x8x32xf32>
    %c23 = arith.constant 23 : index
    %c0_173 = arith.constant 0 : index
    %228 = vector.load %arg3[%c23, %c0_173] : memref<25x32xf32, #tpu.memory_space<vmem>>, vector<1x32xf32>
    %229 = vector.shape_cast %228 : vector<1x32xf32> to vector<32xf32>
    %230 = vector.shape_cast %229 : vector<32xf32> to vector<1x1x32xf32>
    %231 = vector.broadcast %230 : vector<1x1x32xf32> to vector<8x8x32xf32>
    %232 = arith.mulf %227, %231 : vector<8x8x32xf32>
    %233 = arith.addf %225, %232 : vector<8x8x32xf32>
    %c4_174 = arith.constant 4 : index
    %c4_175 = arith.constant 4 : index
    %c0_176 = arith.constant 0 : index
    %c0_177 = arith.constant 0 : index
    %234 = vector.load %arg5[%c4_174, %c4_175, %c0_176, %c0_177] : memref<5x12x8x32xf32, #tpu.memory_space<vmem>>, vector<1x8x8x32xf32>
    %235 = vector.shape_cast %234 : vector<1x8x8x32xf32> to vector<8x8x32xf32>
    %c24 = arith.constant 24 : index
    %c0_178 = arith.constant 0 : index
    %236 = vector.load %arg3[%c24, %c0_178] : memref<25x32xf32, #tpu.memory_space<vmem>>, vector<1x32xf32>
    %237 = vector.shape_cast %236 : vector<1x32xf32> to vector<32xf32>
    %238 = vector.shape_cast %237 : vector<32xf32> to vector<1x1x32xf32>
    %239 = vector.broadcast %238 : vector<1x1x32xf32> to vector<8x8x32xf32>
    %240 = arith.mulf %235, %239 : vector<8x8x32xf32>
    %241 = arith.addf %233, %240 : vector<8x8x32xf32>
    %c0_179 = arith.constant 0 : index
    %c0_180 = arith.constant 0 : index
    %c0_181 = arith.constant 0 : index
    %c0_182 = arith.constant 0 : index
    %242 = vector.load %arg4[%c0_179, %c0_180, %c0_181, %c0_182] : memref<1x8x8x32xf32, #tpu.memory_space<vmem>>, vector<1x8x8x32xf32>
    %243 = vector.shape_cast %242 : vector<1x8x8x32xf32> to vector<8x8x32xf32>
    %244 = vector.shape_cast %241 : vector<8x8x32xf32> to vector<1x8x8x32xf32>
    tpu.vector_store %arg4[%c0_179, %c0_180, %c0_181, %c0_182], %244 {strides = array<i32>} : memref<1x8x8x32xf32, #tpu.memory_space<vmem>>, vector<1x8x8x32xf32>,
    return
  }
  func.func @transform_0(%arg0: i32, %arg1: i32) -> (i32, i32, i32, i32) {
    %c0_i32 = arith.constant 0 : i32
    %c0_i32_0 = arith.constant 0 : i32
    %c0_i32_1 = arith.constant 0 : i32
    return %arg0, %c0_i32, %c0_i32_0, %arg1 : i32, i32, i32, i32
  }
  func.func @transform_1(%arg0: i32, %arg1: i32) -> (i32, i32) {
    %c0_i32 = arith.constant 0 : i32
    %c0_i32_0 = arith.constant 0 : i32
    return %c0_i32, %arg1 : i32, i32
  }
  func.func @transform_2(%arg0: i32, %arg1: i32) -> (i32, i32, i32, i32) {
    %c0_i32 = arith.constant 0 : i32
    %c0_i32_0 = arith.constant 0 : i32
    %c0_i32_1 = arith.constant 0 : i32
    return %arg0, %c0_i32, %c0_i32_0, %arg1 : i32, i32, i32, i32
  }
}

</mosaic_0001>

<llo_original>
// kernel: tpu_custom_call.1
$region0: #{tpu_custom_call.1}
  #allocation0 [shape = 'u32[]', space=smem, size = 0x4, offset = 0x4, fixed_abs, tag = 'smem constant byte address 0x4 - core index']
  #allocation1 [shape = 'u32[144,128]{1,0:T(1,128)}', space=vmem, size = 0x12000, scoped, tag = 'internal scratch']
  #allocation2 [shape = 'f32[5,12,8,32]{3,2,1,0:T(8,128)}', space=vmem, size = 0x3c000, scoped, tag = 'scratch operand']
  %s0 = inlined_call_operand.hbm [shape: f32[2,8,8,32], index: 0, kind: input, shape index: {}]
  %s1 = inlined_call_operand.hbm [shape: f32[25,32], index: 1, kind: input, shape index: {}]
  %s2 = inlined_call_operand.hbm [shape: f32[2,8,8,32], index: 2, kind: output, shape index: {}]
  %s3 = sld [smem:[#allocation0]]
  $region49: #{tpu_custom_call.1} parent=0
    _
  %s5 = ssub.s32 1, %s3
  %s6 = scalar_select 0, %s5, %s3
  $region1: #{tpu_custom_call.1} parent=0
    #allocation3 [shape = 'u8[65536]{0}', space=vmem, size = 0x10000, scoped, tag = 'input window, operand 0']
    #allocation4 [shape = 's32[2]{0}', space=sflag, size = 0x8, scoped, tag = 'scoped memory for tpu_custom_call.1']
    #allocation5 [shape = 's32[2]{0}', space=sflag, size = 0x8, scoped, tag = 'scoped memory for tpu_custom_call.1']
    #allocation6 [shape = 'u8[16384]{0}', space=vmem, size = 0x4000, scoped, tag = 'input window, operand 1, single buffered']
    #allocation7 [shape = 's32[1]{0}', space=sflag, size = 0x4, scoped, tag = 'scoped memory for tpu_custom_call.1']
    #allocation8 [shape = 'u8[65536]{0}', space=vmem, size = 0x10000, scoped, tag = 'output window, operand 0']
    %7 = vsyncpa [#allocation4], 0
    %s8 = scalar_lea.sflag [#allocation4], 1
    %9 = vsyncpa %s8, 0
    %10 = vsyncpa [#allocation7], 0
    %11 = vsyncpa [#allocation5], 0
    %s12 = scalar_lea.sflag [#allocation5], 1
    %13 = vsyncpa %s12, 0
    loop: start=0, step=1, limit=4
    $region2: #{tpu_custom_call.1} parent=1 // loop_pre_header
      _
    $region3: #{tpu_custom_call.1} parent=1 // loop_header
      %s15 = sphi 0, %s19
      %p16 = scmp.ge.s32.totalorder %s15, 4
      %s22 = sphi 0, %s34
      %s23 = sphi 0, %s30
      %s24 = sphi 0, %s22
      %s25 = sphi 0, %s23
      %s26 = sphi 0, %s24
      %s27 = sphi 0, %s25
      %s39 = sphi 0, %s41
      %s42 = sphi 0, %s39
      %s43 = sphi 0, %s42
      %s59 = sphi 0, %s43
      %s65 = sphi 0, %s67
      %s68 = sphi 0, %s65
      %s69 = sphi 0, %s68
      %s85 = sphi 0, %s69
      %s93 = sphi 0, %s95
      %s96 = sphi 0, %s93
      %s97 = sphi 0, %s96
      %s113 = sphi 0, %s97
    $region4: #{tpu_custom_call.1} parent=1 // loop_header_branch
      %18 = sbr.rel (%p16) target = $region8
    $region5: #{tpu_custom_call.1} parent=1 // loop_body
      %s20 = ssub.s32 %s15, 1
      %s21 = ssub.s32 %s15, 2
      %s28 = sadd.s32 1, %s23
      %p29 = scmp.ge.s32.totalorder %s28, 1
      %s30 = scalar_select %p29, 0, %s28
      %s31 = sadd.s32 1, %s22
      %s32 = scalar_select %p29, %s31, %s22
      %p33 = scmp.ge.s32.totalorder %s32, 2
      %s34 = scalar_select %p33, 0, %s32
      %s35 = ssub.s32 %s22, %s34
      %s36 = ssub.s32 %s23, %s30
      %s37 = sor.u32 %s35, %s36
      %p38 = scmp.eq.s32.totalorder %s37, 0
      %s40 = sadd.s32 %s39, 1
      %s41 = scalar_select %p38, %s39, %s40
      %p44 = pneg %p38
      %p45 = scmp.eq.s32.totalorder %s15, 1
      %p46 = por %p44, %p45
      %p47 = scmp.ne.s32.totalorder %s39, %s42
      %p48 = scmp.eq.s32.totalorder %s15, 0
      %p49 = por %p47, %p48
      %p50 = scmp.ne.s32.totalorder %s39, %s42
      %p51 = scmp.eq.s32.totalorder %s20, 1
      %p52 = por %p50, %p51
      %p53 = scmp.ne.s32.totalorder %s42, %s43
      %p54 = scmp.eq.s32.totalorder %s20, 0
      %p55 = por %p53, %p54
      %p56 = scmp.ne.s32.totalorder %s42, %s43
      %p57 = scmp.eq.s32.totalorder %s21, 1
      %p58 = por %p56, %p57
      %p60 = scmp.ne.s32.totalorder %s43, %s59
      %p61 = scmp.eq.s32.totalorder %s21, 0
      %p62 = por %p60, %p61
      %s63 = ssub.s32 %s23, %s30
      %p64 = scmp.eq.s32.totalorder %s63, 0
      %s66 = sadd.s32 %s65, 1
      %s67 = scalar_select %p64, %s65, %s66
      %p70 = pneg %p64
      %p71 = scmp.eq.s32.totalorder %s15, 1
      %p72 = por %p70, %p71
      %p73 = scmp.ne.s32.totalorder %s65, %s68
      %p74 = scmp.eq.s32.totalorder %s15, 0
      %p75 = por %p73, %p74
      %p76 = scmp.ne.s32.totalorder %s65, %s68
      %p77 = scmp.eq.s32.totalorder %s20, 1
      %p78 = por %p76, %p77
      %p79 = scmp.ne.s32.totalorder %s68, %s69
      %p80 = scmp.eq.s32.totalorder %s20, 0
      %p81 = por %p79, %p80
      %p82 = scmp.ne.s32.totalorder %s68, %s69
      %p83 = scmp.eq.s32.totalorder %s21, 1
      %p84 = por %p82, %p83
      %p86 = scmp.ne.s32.totalorder %s69, %s85
      %p87 = scmp.eq.s32.totalorder %s21, 0
      %p88 = por %p86, %p87
      %s89 = ssub.s32 %s22, %s34
      %s90 = ssub.s32 %s23, %s30
      %s91 = sor.u32 %s89, %s90
      %p92 = scmp.eq.s32.totalorder %s91, 0
      %s94 = sadd.s32 %s93, 1
      %s95 = scalar_select %p92, %s93, %s94
      %p98 = pneg %p92
      %p99 = scmp.eq.s32.totalorder %s15, 1
      %p100 = por %p98, %p99
      %p101 = scmp.ne.s32.totalorder %s93, %s96
      %p102 = scmp.eq.s32.totalorder %s15, 0
      %p103 = por %p101, %p102
      %p104 = scmp.ne.s32.totalorder %s93, %s96
      %p105 = scmp.eq.s32.totalorder %s20, 1
      %p106 = por %p104, %p105
      %p107 = scmp.ne.s32.totalorder %s96, %s97
      %p108 = scmp.eq.s32.totalorder %s20, 0
      %p109 = por %p107, %p108
      %p110 = scmp.ne.s32.totalorder %s96, %s97
      %p111 = scmp.eq.s32.totalorder %s21, 1
      %p112 = por %p110, %p111
      %p114 = scmp.ne.s32.totalorder %s97, %s113
      %p115 = scmp.eq.s32.totalorder %s21, 0
      %p116 = por %p114, %p115
      %p117 = scmp.le.s32.totalorder 1, %s15
      %p118 = scmp.lt.s32.totalorder %s15, 3
      %p119 = pnand %p117, %p118
      %p120 = pneg %p119
      // Predicated region
      $region9: #{tpu_custom_call.1} parent=5 // pred_check
        _
      $region10: #{tpu_custom_call.1} parent=5 // pred_check_branch
        %122 = sbr.rel (%p119) target = $region12
      $region11: #{tpu_custom_call.1} parent=5 // pred_region
        %s123 = ssub.s32 %s15, 1
        // Predicated region
        $region13: #{tpu_custom_call.1} parent=11 // pred_check
          %p124 = pneg %p81
        $region14: #{tpu_custom_call.1} parent=11 // pred_check_branch
          %126 = sbr.rel (%p124) target = $region16
        $region15: #{tpu_custom_call.1} parent=11 // pred_region
          %s128 = ssub.s32 512, 512
          %129 = vsyncadd [#allocation7], %s128
          %s130 = smul.addr %s25, 128
          %s131 = scalar_lea.hbm %s1, %s130
          %s132 = sshll.u32 [#allocation6], 4
          %s133 = int_to_ptr.vmem [resolvable:$true] %s132
          %138 = dma.hbm_to_vmem [thread:$0]  %s131, 512, %s133, [#allocation7], 128, 128, 8
        $region16: #{tpu_custom_call.1} parent=11 // pred_fallthru
          _
      $region12: #{tpu_custom_call.1} parent=5 // pred_fallthru
        _
      %p139 = scmp.lt.s32.totalorder %s15, 2
      // Predicated region
      $region17: #{tpu_custom_call.1} parent=5 // pred_check
        %p140 = pneg %p139
      $region18: #{tpu_custom_call.1} parent=5 // pred_check_branch
        %142 = sbr.rel (%p140) target = $region20
      $region19: #{tpu_custom_call.1} parent=5 // pred_region
        // Predicated region
        $region21: #{tpu_custom_call.1} parent=19 // pred_check
          %p143 = pneg %p49
        $region22: #{tpu_custom_call.1} parent=19 // pred_check_branch
          %145 = sbr.rel (%p143) target = $region24
        $region23: #{tpu_custom_call.1} parent=19 // pred_region
          %s146 = sand.u32 %s39, 1
          %s147 = scalar_lea.sflag [#allocation4], %s146
          %s148 = sand.u32 %s39, 1
          %s149 = smul.addr %s148, 64
          %s150 = scalar_lea.vmem [#allocation3], %s149
          %s152 = ssub.s32 1024, 1024
          %153 = vsyncadd %s147, %s152
          %s154 = smul.addr %s22, 8
          %s155 = sadd.s32 %s23, %s154
          %s156 = smul.addr %s155, 128
          %s157 = scalar_lea.hbm %s0, %s156
          %s158 = sshll.u32 %s150, 4
          %s159 = int_to_ptr.vmem [resolvable:$true] %s158
          %164 = dma.hbm_to_vmem [thread:$0]  %s157, 1024, %s159, %s147, 128, 128, 8
        $region24: #{tpu_custom_call.1} parent=19 // pred_fallthru
          _
      $region20: #{tpu_custom_call.1} parent=5 // pred_fallthru
        _
      %p165 = scmp.le.s32.totalorder 1, %s15
      %p166 = scmp.lt.s32.totalorder %s15, 3
      %p167 = pnand %p165, %p166
      %p168 = pneg %p167
      // Predicated region
      $region25: #{tpu_custom_call.1} parent=5 // pred_check
        _
      $region26: #{tpu_custom_call.1} parent=5 // pred_check_branch
        %170 = sbr.rel (%p167) target = $region28
      $region27: #{tpu_custom_call.1} parent=5 // pred_region
        %s171 = ssub.s32 %s15, 1
        %s172 = sand.u32 %s42, 1
        %s173 = scalar_lea.sflag [#allocation4], %s172
        %s174 = sand.u32 %s42, 1
        %s175 = smul.addr %s174, 64
        %s176 = scalar_lea.vmem [#allocation3], %s175
        // Predicated region
        $region29: #{tpu_custom_call.1} parent=27 // pred_check
          %p177 = pneg %p55
        $region30: #{tpu_custom_call.1} parent=27 // pred_check_branch
          %179 = sbr.rel (%p177) target = $region32
        $region31: #{tpu_custom_call.1} parent=27 // pred_region
          %180 = dma.done %s173, 1024
        $region32: #{tpu_custom_call.1} parent=27 // pred_fallthru
          _
        // Predicated region
        $region33: #{tpu_custom_call.1} parent=27 // pred_check
          %p181 = pneg %p81
        $region34: #{tpu_custom_call.1} parent=27 // pred_check_branch
          %183 = sbr.rel (%p181) target = $region36
        $region35: #{tpu_custom_call.1} parent=27 // pred_region
          %184 = dma.done [#allocation7], 512
        $region36: #{tpu_custom_call.1} parent=27 // pred_fallthru
          _
        %s185 = sand.u32 %s42, 1
        %s186 = scalar_lea.sflag [#allocation4], %s185
        %s187 = sand.u32 %s42, 1
        %s188 = smul.addr %s187, 64
        %s189 = scalar_lea.vmem [#allocation3], %s188
        %p190 = pneg %p55
        %p191 = pneg %p52
        %p192 = pneg %p81
        %p193 = pneg %p78
        %p194 = pneg %p109
        %p195 = pneg %p106
        %s196 = sand.u32 %s96, 1
        %s197 = scalar_lea.sflag [#allocation5], %s196
        %s198 = sand.u32 %s96, 1
        %s199 = smul.addr %s198, 64
        %s200 = scalar_lea.vmem [#allocation8], %s199
        %v201 = vld [vmem:[%s176] sm:$0xff]
        %v202 = vld [vmem:[%s176 + $0x8] sm:$0xff]
        %v203 = vld [vmem:[%s176 + $0x10] sm:$0xff]
        %v204 = vld [vmem:[%s176 + $0x18] sm:$0xff]
        %v205 = vld [vmem:[%s176 + $0x20] sm:$0xff]
        %v206 = vld [vmem:[%s176 + $0x28] sm:$0xff]
        %v207 = vld [vmem:[%s176 + $0x30] sm:$0xff]
        %v208 = vld [vmem:[%s176 + $0x38] sm:$0xff]
        %vm209 = vcmask 261120
        %210 = vst.msk [vmem:[#allocation2] sm:$0xff] %vm209, 0.0
        %211 = vst.msk [vmem:[#allocation2 + $0x8] sm:$0xff] %vm209, 0.0
        %212 = vst.msk [vmem:[#allocation2 + $0x60] sm:$0xff] %vm209, 0.0
        %213 = vst.msk [vmem:[#allocation2 + $0x68] sm:$0xff] %vm209, 0.0
        %214 = vst.msk [vmem:[#allocation2 + $0xc0] sm:$0xff] %vm209, 0.0
        %215 = vst.msk [vmem:[#allocation2 + $0xc8] sm:$0xff] %vm209, 0.0
        %216 = vst.msk [vmem:[#allocation2 + $0x120] sm:$0xff] %vm209, 0.0
        %217 = vst.msk [vmem:[#allocation2 + $0x128] sm:$0xff] %vm209, 0.0
        %218 = vst.msk [vmem:[#allocation2 + $0x180] sm:$0xff] %vm209, 0.0
        %219 = vst.msk [vmem:[#allocation2 + $0x188] sm:$0xff] %vm209, 0.0
        %s220 = scalar_lea.vmem [#allocation2], 80
        %221 = vst.msk [vmem:[%s220] sm:$0xff] %vm209, 0.0
        %222 = vst.msk [vmem:[%s220 + $0x8] sm:$0xff] %vm209, 0.0
        %223 = vst.msk [vmem:[%s220 + $0x60] sm:$0xff] %vm209, 0.0
        %224 = vst.msk [vmem:[%s220 + $0x68] sm:$0xff] %vm209, 0.0
        %225 = vst.msk [vmem:[%s220 + $0xc0] sm:$0xff] %vm209, 0.0
        %226 = vst.msk [vmem:[%s220 + $0xc8] sm:$0xff] %vm209, 0.0
        %227 = vst.msk [vmem:[%s220 + $0x120] sm:$0xff] %vm209, 0.0
        %228 = vst.msk [vmem:[%s220 + $0x128] sm:$0xff] %vm209, 0.0
        %229 = vst.msk [vmem:[%s220 + $0x180] sm:$0xff] %vm209, 0.0
        %230 = vst.msk [vmem:[%s220 + $0x188] sm:$0xff] %vm209, 0.0
        %s231 = scalar_lea.vmem [#allocation2], 16
        %vm232 = vcmask 254976
        %233 = vst.msk [vmem:[%s231] sm:$0x3] %vm232, 0.0
        %234 = vst.msk [vmem:[%s231 + $0x8] sm:$0x3] %vm232, 0.0
        %235 = vst.msk [vmem:[%s231 + $0x10] sm:$0x3] %vm232, 0.0
        %236 = vst.msk [vmem:[%s231 + $0x18] sm:$0x3] %vm232, 0.0
        %237 = vst.msk [vmem:[%s231 + $0x20] sm:$0x3] %vm232, 0.0
        %238 = vst.msk [vmem:[%s231 + $0x28] sm:$0x3] %vm232, 0.0
        %239 = vst.msk [vmem:[%s231 + $0x30] sm:$0x3] %vm232, 0.0
        %240 = vst.msk [vmem:[%s231 + $0x38] sm:$0x3] %vm232, 0.0
        %vm241 = vcmask 259072
        %242 = vst.msk [vmem:[%s231 + $0x2] sm:$0x3f] %vm241, %v201
        %243 = vst.msk [vmem:[%s231 + $0xa] sm:$0x3f] %vm241, %v202
        %244 = vst.msk [vmem:[%s231 + $0x12] sm:$0x3f] %vm241, %v203
        %245 = vst.msk [vmem:[%s231 + $0x1a] sm:$0x3f] %vm241, %v204
        %246 = vst.msk [vmem:[%s231 + $0x22] sm:$0x3f] %vm241, %v205
        %247 = vst.msk [vmem:[%s231 + $0x2a] sm:$0x3f] %vm241, %v206
        %248 = vst.msk [vmem:[%s231 + $0x32] sm:$0x3f] %vm241, %v207
        %249 = vst.msk [vmem:[%s231 + $0x3a] sm:$0x3f] %vm241, %v208
        %s250 = scalar_lea.vmem [#allocation2], 112
        %vm251 = vcmask 253952
        %252 = vst.msk [vmem:[%s250] sm:$0x1] %vm251, 0.0
        %253 = vst.msk [vmem:[%s250 + $0x8] sm:$0x1] %vm251, 0.0
        %254 = vst.msk [vmem:[%s250 + $0x10] sm:$0x1] %vm251, 0.0
        %255 = vst.msk [vmem:[%s250 + $0x18] sm:$0x1] %vm251, 0.0
        %256 = vst.msk [vmem:[%s250 + $0x20] sm:$0x1] %vm251, 0.0
        %257 = vst.msk [vmem:[%s250 + $0x28] sm:$0x1] %vm251, 0.0
        %258 = vst.msk [vmem:[%s250 + $0x30] sm:$0x1] %vm251, 0.0
        %259 = vst.msk [vmem:[%s250 + $0x38] sm:$0x1] %vm251, 0.0
        %vm260 = vcmask 260096
        %261 = vst.msk [vmem:[%s250 + $0x1] sm:$0x7f] %vm260, %v201
        %262 = vst.msk [vmem:[%s250 + $0x9] sm:$0x7f] %vm260, %v202
        %263 = vst.msk [vmem:[%s250 + $0x11] sm:$0x7f] %vm260, %v203
        %264 = vst.msk [vmem:[%s250 + $0x19] sm:$0x7f] %vm260, %v204
        %265 = vst.msk [vmem:[%s250 + $0x21] sm:$0x7f] %vm260, %v205
        %266 = vst.msk [vmem:[%s250 + $0x29] sm:$0x7f] %vm260, %v206
        %267 = vst.msk [vmem:[%s250 + $0x31] sm:$0x7f] %vm260, %v207
        %268 = vst.msk [vmem:[%s250 + $0x39] sm:$0x7f] %vm260, %v208
        %s269 = scalar_lea.vmem [#allocation2], 208
        %270 = vst.msk [vmem:[%s269] sm:$0xff] %vm209, %v201
        %271 = vst.msk [vmem:[%s269 + $0x8] sm:$0xff] %vm209, %v202
        %272 = vst.msk [vmem:[%s269 + $0x10] sm:$0xff] %vm209, %v203
        %273 = vst.msk [vmem:[%s269 + $0x18] sm:$0xff] %vm209, %v204
        %274 = vst.msk [vmem:[%s269 + $0x20] sm:$0xff] %vm209, %v205
        %275 = vst.msk [vmem:[%s269 + $0x28] sm:$0xff] %vm209, %v206
        %276 = vst.msk [vmem:[%s269 + $0x30] sm:$0xff] %vm209, %v207
        %277 = vst.msk [vmem:[%s269 + $0x38] sm:$0xff] %vm209, %v208
        %s278 = scalar_lea.vmem [#allocation2], 304
        %279 = vst.msk [vmem:[%s278 + $0x7] sm:$0x1] %vm251, 0.0
        %280 = vst.msk [vmem:[%s278 + $0xf] sm:$0x1] %vm251, 0.0
        %281 = vst.msk [vmem:[%s278 + $0x17] sm:$0x1] %vm251, 0.0
        %282 = vst.msk [vmem:[%s278 + $0x1f] sm:$0x1] %vm251, 0.0
        %283 = vst.msk [vmem:[%s278 + $0x27] sm:$0x1] %vm251, 0.0
        %284 = vst.msk [vmem:[%s278 + $0x2f] sm:$0x1] %vm251, 0.0
        %285 = vst.msk [vmem:[%s278 + $0x37] sm:$0x1] %vm251, 0.0
        %286 = vst.msk [vmem:[%s278 + $0x3f] sm:$0x1] %vm251, 0.0
        %vm287 = vcmask 261121
        %288 = vst.msk [vmem:[%s278 - $0x1] sm:$0xfe] %vm287, %v201
        %289 = vst.msk [vmem:[%s278 + $0x7] sm:$0xfe] %vm287, %v202
        %290 = vst.msk [vmem:[%s278 + $0xf] sm:$0xfe] %vm287, %v203
        %291 = vst.msk [vmem:[%s278 + $0x17] sm:$0xfe] %vm287, %v204
        %292 = vst.msk [vmem:[%s278 + $0x1f] sm:$0xfe] %vm287, %v205
        %293 = vst.msk [vmem:[%s278 + $0x27] sm:$0xfe] %vm287, %v206
        %294 = vst.msk [vmem:[%s278 + $0x2f] sm:$0xfe] %vm287, %v207
        %295 = vst.msk [vmem:[%s278 + $0x37] sm:$0xfe] %vm287, %v208
        %s296 = scalar_lea.vmem [#allocation2], 400
        %297 = vst.msk [vmem:[%s296 + $0x6] sm:$0x3] %vm232, 0.0
        %298 = vst.msk [vmem:[%s296 + $0xe] sm:$0x3] %vm232, 0.0
        %299 = vst.msk [vmem:[%s296 + $0x16] sm:$0x3] %vm232, 0.0
        %300 = vst.msk [vmem:[%s296 + $0x1e] sm:$0x3] %vm232, 0.0
        %301 = vst.msk [vmem:[%s296 + $0x26] sm:$0x3] %vm232, 0.0
        %302 = vst.msk [vmem:[%s296 + $0x2e] sm:$0x3] %vm232, 0.0
        %303 = vst.msk [vmem:[%s296 + $0x36] sm:$0x3] %vm232, 0.0
        %304 = vst.msk [vmem:[%s296 + $0x3e] sm:$0x3] %vm232, 0.0
        %vm305 = vcmask 261122
        %306 = vst.msk [vmem:[%s296 - $0x2] sm:$0xfc] %vm305, %v201
        %307 = vst.msk [vmem:[%s296 + $0x6] sm:$0xfc] %vm305, %v202
        %308 = vst.msk [vmem:[%s296 + $0xe] sm:$0xfc] %vm305, %v203
        %309 = vst.msk [vmem:[%s296 + $0x16] sm:$0xfc] %vm305, %v204
        %310 = vst.msk [vmem:[%s296 + $0x1e] sm:$0xfc] %vm305, %v205
        %311 = vst.msk [vmem:[%s296 + $0x26] sm:$0xfc] %vm305, %v206
        %312 = vst.msk [vmem:[%s296 + $0x2e] sm:$0xfc] %vm305, %v207
        %313 = vst.msk [vmem:[%s296 + $0x36] sm:$0xfc] %vm305, %v208
        %v314 = vld [vmem:[#allocation2] sm:$0xff]
        %v315 = vld [vmem:[#allocation2 + $0x8] sm:$0xff]
        %v316 = vld [vmem:[#allocation2 + $0x10] sm:$0xff]
        %v317 = vld [vmem:[#allocation2 + $0x18] sm:$0xff]
        %v318 = vld [vmem:[#allocation2 + $0x20] sm:$0xff]
        %v319 = vld [vmem:[#allocation2 + $0x28] sm:$0xff]
        %v320 = vld [vmem:[#allocation2 + $0x30] sm:$0xff]
        %v321 = vld [vmem:[#allocation2 + $0x38] sm:$0xff]
        %v322 = vld [vmem:[#allocation6] sm:$0x1]
        %v323 = vlaneseq
        %v324 = vshrl.u32 %v323, 7
        %v325 = vsub.s32 0, %v324
        %v326 = vrot.slane %v322, %v325
        %v327 = vmul.f32 %v314, %v326
        %v328 = vmul.f32 %v315, %v326
        %v329 = vmul.f32 %v316, %v326
        %v330 = vmul.f32 %v317, %v326
        %v331 = vmul.f32 %v318, %v326
        %v332 = vmul.f32 %v319, %v326
        %v333 = vmul.f32 %v320, %v326
        %v334 = vmul.f32 %v321, %v326
        %v335 = vadd.f32 %v327, 0.0
        %v336 = vadd.f32 %v328, 0.0
        %v337 = vadd.f32 %v329, 0.0
        %v338 = vadd.f32 %v330, 0.0
        %v339 = vadd.f32 %v331, 0.0
        %v340 = vadd.f32 %v332, 0.0
        %v341 = vadd.f32 %v333, 0.0
        %v342 = vadd.f32 %v334, 0.0
        %s343 = scalar_lea.vmem [#allocation2], 96
        %v344 = vld [vmem:[%s343] sm:$0xff]
        %v345 = vld [vmem:[%s343 + $0x8] sm:$0xff]
        %v346 = vld [vmem:[%s343 + $0x10] sm:$0xff]
        %v347 = vld [vmem:[%s343 + $0x18] sm:$0xff]
        %v348 = vld [vmem:[%s343 + $0x20] sm:$0xff]
        %v349 = vld [vmem:[%s343 + $0x28] sm:$0xff]
        %v350 = vld [vmem:[%s343 + $0x30] sm:$0xff]
        %v351 = vld [vmem:[%s343 + $0x38] sm:$0xff]
        %v352 = vld [vmem:[#allocation6 + $0x1] sm:$0x1]
        %v353 = vlaneseq
        %v354 = vshrl.u32 %v353, 7
        %v355 = vsub.s32 0, %v354
        %v356 = vrot.slane %v352, %v355
        %v357 = vmul.f32 %v344, %v356
        %v358 = vmul.f32 %v345, %v356
        %v359 = vmul.f32 %v346, %v356
        %v360 = vmul.f32 %v347, %v356
        %v361 = vmul.f32 %v348, %v356
        %v362 = vmul.f32 %v349, %v356
        %v363 = vmul.f32 %v350, %v356
        %v364 = vmul.f32 %v351, %v356
        %v365 = vadd.f32 %v335, %v357
        %v366 = vadd.f32 %v336, %v358
        %v367 = vadd.f32 %v337, %v359
        %v368 = vadd.f32 %v338, %v360
        %v369 = vadd.f32 %v339, %v361
        %v370 = vadd.f32 %v340, %v362
        %v371 = vadd.f32 %v341, %v363
        %v372 = vadd.f32 %v342, %v364
        %s373 = scalar_lea.vmem [#allocation2], 192
        %v374 = vld [vmem:[%s373] sm:$0xff]
        %v375 = vld [vmem:[%s373 + $0x8] sm:$0xff]
        %v376 = vld [vmem:[%s373 + $0x10] sm:$0xff]
        %v377 = vld [vmem:[%s373 + $0x18] sm:$0xff]
        %v378 = vld [vmem:[%s373 + $0x20] sm:$0xff]
        %v379 = vld [vmem:[%s373 + $0x28] sm:$0xff]
        %v380 = vld [vmem:[%s373 + $0x30] sm:$0xff]
        %v381 = vld [vmem:[%s373 + $0x38] sm:$0xff]
        %v382 = vld [vmem:[#allocation6 + $0x2] sm:$0x1]
        %v383 = vlaneseq
        %v384 = vshrl.u32 %v383, 7
        %v385 = vsub.s32 0, %v384
        %v386 = vrot.slane %v382, %v385
        %v387 = vmul.f32 %v374, %v386
        %v388 = vmul.f32 %v375, %v386
        %v389 = vmul.f32 %v376, %v386
        %v390 = vmul.f32 %v377, %v386
        %v391 = vmul.f32 %v378, %v386
        %v392 = vmul.f32 %v379, %v386
        %v393 = vmul.f32 %v380, %v386
        %v394 = vmul.f32 %v381, %v386
        %v395 = vadd.f32 %v365, %v387
        %v396 = vadd.f32 %v366, %v388
        %v397 = vadd.f32 %v367, %v389
        %v398 = vadd.f32 %v368, %v390
        %v399 = vadd.f32 %v369, %v391
        %v400 = vadd.f32 %v370, %v392
        %v401 = vadd.f32 %v371, %v393
        %v402 = vadd.f32 %v372, %v394
        %s403 = scalar_lea.vmem [#allocation2], 288
        %v404 = vld [vmem:[%s403] sm:$0xff]
        %v405 = vld [vmem:[%s403 + $0x8] sm:$0xff]
        %v406 = vld [vmem:[%s403 + $0x10] sm:$0xff]
        %v407 = vld [vmem:[%s403 + $0x18] sm:$0xff]
        %v408 = vld [vmem:[%s403 + $0x20] sm:$0xff]
        %v409 = vld [vmem:[%s403 + $0x28] sm:$0xff]
        %v410 = vld [vmem:[%s403 + $0x30] sm:$0xff]
        %v411 = vld [vmem:[%s403 + $0x38] sm:$0xff]
        %v412 = vld [vmem:[#allocation6 + $0x3] sm:$0x1]
        %v413 = vlaneseq
        %v414 = vshrl.u32 %v413, 7
        %v415 = vsub.s32 0, %v414
        %v416 = vrot.slane %v412, %v415
        %v417 = vmul.f32 %v404, %v416
        %v418 = vmul.f32 %v405, %v416
        %v419 = vmul.f32 %v406, %v416
        %v420 = vmul.f32 %v407, %v416
        %v421 = vmul.f32 %v408, %v416
        %v422 = vmul.f32 %v409, %v416
        %v423 = vmul.f32 %v410, %v416
        %v424 = vmul.f32 %v411, %v416
        %v425 = vadd.f32 %v395, %v417
        %v426 = vadd.f32 %v396, %v418
        %v427 = vadd.f32 %v397, %v419
        %v428 = vadd.f32 %v398, %v420
        %v429 = vadd.f32 %v399, %v421
        %v430 = vadd.f32 %v400, %v422
        %v431 = vadd.f32 %v401, %v423
        %v432 = vadd.f32 %v402, %v424
        %s433 = scalar_lea.vmem [#allocation2], 384
        %v434 = vld [vmem:[%s433] sm:$0xff]
        %v435 = vld [vmem:[%s433 + $0x8] sm:$0xff]
        %v436 = vld [vmem:[%s433 + $0x10] sm:$0xff]
        %v437 = vld [vmem:[%s433 + $0x18] sm:$0xff]
        %v438 = vld [vmem:[%s433 + $0x20] sm:$0xff]
        %v439 = vld [vmem:[%s433 + $0x28] sm:$0xff]
        %v440 = vld [vmem:[%s433 + $0x30] sm:$0xff]
        %v441 = vld [vmem:[%s433 + $0x38] sm:$0xff]
        %v442 = vld [vmem:[#allocation6 + $0x4] sm:$0x1]
        %v443 = vlaneseq
        %v444 = vshrl.u32 %v443, 7
        %v445 = vsub.s32 0, %v444
        %v446 = vrot.slane %v442, %v445
        %v447 = vmul.f32 %v434, %v446
        %v448 = vmul.f32 %v435, %v446
        %v449 = vmul.f32 %v436, %v446
        %v450 = vmul.f32 %v437, %v446
        %v451 = vmul.f32 %v438, %v446
        %v452 = vmul.f32 %v439, %v446
        %v453 = vmul.f32 %v440, %v446
        %v454 = vmul.f32 %v441, %v446
        %v455 = vadd.f32 %v425, %v447
        %v456 = vadd.f32 %v426, %v448
        %v457 = vadd.f32 %v427, %v449
        %v458 = vadd.f32 %v428, %v450
        %v459 = vadd.f32 %v429, %v451
        %v460 = vadd.f32 %v430, %v452
        %v461 = vadd.f32 %v431, %v453
        %v462 = vadd.f32 %v432, %v454
        %s463 = scalar_lea.vmem [#allocation2], 8
        %v464 = vld [vmem:[%s463] sm:$0xff]
        %v465 = vld [vmem:[%s463 + $0x8] sm:$0xff]
        %v466 = vld [vmem:[%s463 + $0x10] sm:$0xff]
        %v467 = vld [vmem:[%s463 + $0x18] sm:$0xff]
        %v468 = vld [vmem:[%s463 + $0x20] sm:$0xff]
        %v469 = vld [vmem:[%s463 + $0x28] sm:$0xff]
        %v470 = vld [vmem:[%s463 + $0x30] sm:$0xff]
        %v471 = vld [vmem:[%s463 + $0x38] sm:$0xff]
        %v472 = vld [vmem:[#allocation6 + $0x5] sm:$0x1]
        %v473 = vlaneseq
        %v474 = vshrl.u32 %v473, 7
        %v475 = vsub.s32 0, %v474
        %v476 = vrot.slane %v472, %v475
        %v477 = vmul.f32 %v464, %v476
        %v478 = vmul.f32 %v465, %v476
        %v479 = vmul.f32 %v466, %v476
        %v480 = vmul.f32 %v467, %v476
        %v481 = vmul.f32 %v468, %v476
        %v482 = vmul.f32 %v469, %v476
        %v483 = vmul.f32 %v470, %v476
        %v484 = vmul.f32 %v471, %v476
        %v485 = vadd.f32 %v455, %v477
        %v486 = vadd.f32 %v456, %v478
        %v487 = vadd.f32 %v457, %v479
        %v488 = vadd.f32 %v458, %v480
        %v489 = vadd.f32 %v459, %v481
        %v490 = vadd.f32 %v460, %v482
        %v491 = vadd.f32 %v461, %v483
        %v492 = vadd.f32 %v462, %v484
        %s493 = scalar_lea.vmem [#allocation2], 104
        %v494 = vld [vmem:[%s493] sm:$0xff]
        %v495 = vld [vmem:[%s493 + $0x8] sm:$0xff]
        %v496 = vld [vmem:[%s493 + $0x10] sm:$0xff]
        %v497 = vld [vmem:[%s493 + $0x18] sm:$0xff]
        %v498 = vld [vmem:[%s493 + $0x20] sm:$0xff]
        %v499 = vld [vmem:[%s493 + $0x28] sm:$0xff]
        %v500 = vld [vmem:[%s493 + $0x30] sm:$0xff]
        %v501 = vld [vmem:[%s493 + $0x38] sm:$0xff]
        %v502 = vld [vmem:[#allocation6 + $0x6] sm:$0x1]
        %v503 = vlaneseq
        %v504 = vshrl.u32 %v503, 7
        %v505 = vsub.s32 0, %v504
        %v506 = vrot.slane %v502, %v505
        %v507 = vmul.f32 %v494, %v506
        %v508 = vmul.f32 %v495, %v506
        %v509 = vmul.f32 %v496, %v506
        %v510 = vmul.f32 %v497, %v506
        %v511 = vmul.f32 %v498, %v506
        %v512 = vmul.f32 %v499, %v506
        %v513 = vmul.f32 %v500, %v506
        %v514 = vmul.f32 %v501, %v506
        %v515 = vadd.f32 %v485, %v507
        %v516 = vadd.f32 %v486, %v508
        %v517 = vadd.f32 %v487, %v509
        %v518 = vadd.f32 %v488, %v510
        %v519 = vadd.f32 %v489, %v511
        %v520 = vadd.f32 %v490, %v512
        %v521 = vadd.f32 %v491, %v513
        %v522 = vadd.f32 %v492, %v514
        %s523 = scalar_lea.vmem [#allocation2], 200
        %v524 = vld [vmem:[%s523] sm:$0xff]
        %v525 = vld [vmem:[%s523 + $0x8] sm:$0xff]
        %v526 = vld [vmem:[%s523 + $0x10] sm:$0xff]
        %v527 = vld [vmem:[%s523 + $0x18] sm:$0xff]
        %v528 = vld [vmem:[%s523 + $0x20] sm:$0xff]
        %v529 = vld [vmem:[%s523 + $0x28] sm:$0xff]
        %v530 = vld [vmem:[%s523 + $0x30] sm:$0xff]
        %v531 = vld [vmem:[%s523 + $0x38] sm:$0xff]
        %v532 = vld [vmem:[#allocation6 + $0x7] sm:$0x1]
        %v533 = vlaneseq
        %v534 = vshrl.u32 %v533, 7
        %v535 = vsub.s32 0, %v534
        %v536 = vrot.slane %v532, %v535
        %v537 = vmul.f32 %v524, %v536
        %v538 = vmul.f32 %v525, %v536
        %v539 = vmul.f32 %v526, %v536
        %v540 = vmul.f32 %v527, %v536
        %v541 = vmul.f32 %v528, %v536
        %v542 = vmul.f32 %v529, %v536
        %v543 = vmul.f32 %v530, %v536
        %v544 = vmul.f32 %v531, %v536
        %v545 = vadd.f32 %v515, %v537
        %v546 = vadd.f32 %v516, %v538
        %v547 = vadd.f32 %v517, %v539
        %v548 = vadd.f32 %v518, %v540
        %v549 = vadd.f32 %v519, %v541
        %v550 = vadd.f32 %v520, %v542
        %v551 = vadd.f32 %v521, %v543
        %v552 = vadd.f32 %v522, %v544
        %s553 = scalar_lea.vmem [#allocation2], 296
        %v554 = vld [vmem:[%s553] sm:$0xff]
        %v555 = vld [vmem:[%s553 + $0x8] sm:$0xff]
        %v556 = vld [vmem:[%s553 + $0x10] sm:$0xff]
        %v557 = vld [vmem:[%s553 + $0x18] sm:$0xff]
        %v558 = vld [vmem:[%s553 + $0x20] sm:$0xff]
        %v559 = vld [vmem:[%s553 + $0x28] sm:$0xff]
        %v560 = vld [vmem:[%s553 + $0x30] sm:$0xff]
        %v561 = vld [vmem:[%s553 + $0x38] sm:$0xff]
        %v562 = vld [vmem:[#allocation6 + $0x8] sm:$0x1]
        %v563 = vlaneseq
        %v564 = vshrl.u32 %v563, 7
        %v565 = vsub.s32 0, %v564
        %v566 = vrot.slane %v562, %v565
        %v567 = vmul.f32 %v554, %v566
        %v568 = vmul.f32 %v555, %v566
        %v569 = vmul.f32 %v556, %v566
        %v570 = vmul.f32 %v557, %v566
        %v571 = vmul.f32 %v558, %v566
        %v572 = vmul.f32 %v559, %v566
        %v573 = vmul.f32 %v560, %v566
        %v574 = vmul.f32 %v561, %v566
        %v575 = vadd.f32 %v545, %v567
        %v576 = vadd.f32 %v546, %v568
        %v577 = vadd.f32 %v547, %v569
        %v578 = vadd.f32 %v548, %v570
        %v579 = vadd.f32 %v549, %v571
        %v580 = vadd.f32 %v550, %v572
        %v581 = vadd.f32 %v551, %v573
        %v582 = vadd.f32 %v552, %v574
        %s583 = scalar_lea.vmem [#allocation2], 392
        %v584 = vld [vmem:[%s583] sm:$0xff]
        %v585 = vld [vmem:[%s583 + $0x8] sm:$0xff]
        %v586 = vld [vmem:[%s583 + $0x10] sm:$0xff]
        %v587 = vld [vmem:[%s583 + $0x18] sm:$0xff]
        %v588 = vld [vmem:[%s583 + $0x20] sm:$0xff]
        %v589 = vld [vmem:[%s583 + $0x28] sm:$0xff]
        %v590 = vld [vmem:[%s583 + $0x30] sm:$0xff]
        %v591 = vld [vmem:[%s583 + $0x38] sm:$0xff]
        %v592 = vld [vmem:[#allocation6 + $0x9] sm:$0x1]
        %v593 = vlaneseq
        %v594 = vshrl.u32 %v593, 7
        %v595 = vsub.s32 0, %v594
        %v596 = vrot.slane %v592, %v595
        %v597 = vmul.f32 %v584, %v596
        %v598 = vmul.f32 %v585, %v596
        %v599 = vmul.f32 %v586, %v596
        %v600 = vmul.f32 %v587, %v596
        %v601 = vmul.f32 %v588, %v596
        %v602 = vmul.f32 %v589, %v596
        %v603 = vmul.f32 %v590, %v596
        %v604 = vmul.f32 %v591, %v596
        %v605 = vadd.f32 %v575, %v597
        %v606 = vadd.f32 %v576, %v598
        %v607 = vadd.f32 %v577, %v599
        %v608 = vadd.f32 %v578, %v600
        %v609 = vadd.f32 %v579, %v601
        %v610 = vadd.f32 %v580, %v602
        %v611 = vadd.f32 %v581, %v603
        %v612 = vadd.f32 %v582, %v604
        %v613 = vld [vmem:[%s231] sm:$0xff]
        %v614 = vld [vmem:[%s231 + $0x8] sm:$0xff]
        %v615 = vld [vmem:[%s231 + $0x10] sm:$0xff]
        %v616 = vld [vmem:[%s231 + $0x18] sm:$0xff]
        %v617 = vld [vmem:[%s231 + $0x20] sm:$0xff]
        %v618 = vld [vmem:[%s231 + $0x28] sm:$0xff]
        %v619 = vld [vmem:[%s231 + $0x30] sm:$0xff]
        %v620 = vld [vmem:[%s231 + $0x38] sm:$0xff]
        %v621 = vld [vmem:[#allocation6 + $0xa] sm:$0x1]
        %v622 = vlaneseq
        %v623 = vshrl.u32 %v622, 7
        %v624 = vsub.s32 0, %v623
        %v625 = vrot.slane %v621, %v624
        %v626 = vmul.f32 %v613, %v625
        %v627 = vmul.f32 %v614, %v625
        %v628 = vmul.f32 %v615, %v625
        %v629 = vmul.f32 %v616, %v625
        %v630 = vmul.f32 %v617, %v625
        %v631 = vmul.f32 %v618, %v625
        %v632 = vmul.f32 %v619, %v625
        %v633 = vmul.f32 %v620, %v625
        %v634 = vadd.f32 %v605, %v626
        %v635 = vadd.f32 %v606, %v627
        %v636 = vadd.f32 %v607, %v628
        %v637 = vadd.f32 %v608, %v629
        %v638 = vadd.f32 %v609, %v630
        %v639 = vadd.f32 %v610, %v631
        %v640 = vadd.f32 %v611, %v632
        %v641 = vadd.f32 %v612, %v633
        %v642 = vld [vmem:[%s250] sm:$0xff]
        %v643 = vld [vmem:[%s250 + $0x8] sm:$0xff]
        %v644 = vld [vmem:[%s250 + $0x10] sm:$0xff]
        %v645 = vld [vmem:[%s250 + $0x18] sm:$0xff]
        %v646 = vld [vmem:[%s250 + $0x20] sm:$0xff]
        %v647 = vld [vmem:[%s250 + $0x28] sm:$0xff]
        %v648 = vld [vmem:[%s250 + $0x30] sm:$0xff]
        %v649 = vld [vmem:[%s250 + $0x38] sm:$0xff]
        %v650 = vld [vmem:[#allocation6 + $0xb] sm:$0x1]
        %v651 = vlaneseq
        %v652 = vshrl.u32 %v651, 7
        %v653 = vsub.s32 0, %v652
        %v654 = vrot.slane %v650, %v653
        %v655 = vmul.f32 %v642, %v654
        %v656 = vmul.f32 %v643, %v654
        %v657 = vmul.f32 %v644, %v654
        %v658 = vmul.f32 %v645, %v654
        %v659 = vmul.f32 %v646, %v654
        %v660 = vmul.f32 %v647, %v654
        %v661 = vmul.f32 %v648, %v654
        %v662 = vmul.f32 %v649, %v654
        %v663 = vadd.f32 %v634, %v655
        %v664 = vadd.f32 %v635, %v656
        %v665 = vadd.f32 %v636, %v657
        %v666 = vadd.f32 %v637, %v658
        %v667 = vadd.f32 %v638, %v659
        %v668 = vadd.f32 %v639, %v660
        %v669 = vadd.f32 %v640, %v661
        %v670 = vadd.f32 %v641, %v662
        %v671 = vld [vmem:[%s269] sm:$0xff]
        %v672 = vld [vmem:[%s269 + $0x8] sm:$0xff]
        %v673 = vld [vmem:[%s269 + $0x10] sm:$0xff]
        %v674 = vld [vmem:[%s269 + $0x18] sm:$0xff]
        %v675 = vld [vmem:[%s269 + $0x20] sm:$0xff]
        %v676 = vld [vmem:[%s269 + $0x28] sm:$0xff]
        %v677 = vld [vmem:[%s269 + $0x30] sm:$0xff]
        %v678 = vld [vmem:[%s269 + $0x38] sm:$0xff]
        %v679 = vld [vmem:[#allocation6 + $0xc] sm:$0x1]
        %v680 = vlaneseq
        %v681 = vshrl.u32 %v680, 7
        %v682 = vsub.s32 0, %v681
        %v683 = vrot.slane %v679, %v682
        %v684 = vmul.f32 %v671, %v683
        %v685 = vmul.f32 %v672, %v683
        %v686 = vmul.f32 %v673, %v683
        %v687 = vmul.f32 %v674, %v683
        %v688 = vmul.f32 %v675, %v683
        %v689 = vmul.f32 %v676, %v683
        %v690 = vmul.f32 %v677, %v683
        %v691 = vmul.f32 %v678, %v683
        %v692 = vadd.f32 %v663, %v684
        %v693 = vadd.f32 %v664, %v685
        %v694 = vadd.f32 %v665, %v686
        %v695 = vadd.f32 %v666, %v687
        %v696 = vadd.f32 %v667, %v688
        %v697 = vadd.f32 %v668, %v689
        %v698 = vadd.f32 %v669, %v690
        %v699 = vadd.f32 %v670, %v691
        %v700 = vld [vmem:[%s278] sm:$0xff]
        %v701 = vld [vmem:[%s278 + $0x8] sm:$0xff]
        %v702 = vld [vmem:[%s278 + $0x10] sm:$0xff]
        %v703 = vld [vmem:[%s278 + $0x18] sm:$0xff]
        %v704 = vld [vmem:[%s278 + $0x20] sm:$0xff]
        %v705 = vld [vmem:[%s278 + $0x28] sm:$0xff]
        %v706 = vld [vmem:[%s278 + $0x30] sm:$0xff]
        %v707 = vld [vmem:[%s278 + $0x38] sm:$0xff]
        %v708 = vld [vmem:[#allocation6 + $0xd] sm:$0x1]
        %v709 = vlaneseq
        %v710 = vshrl.u32 %v709, 7
        %v711 = vsub.s32 0, %v710
        %v712 = vrot.slane %v708, %v711
        %v713 = vmul.f32 %v700, %v712
        %v714 = vmul.f32 %v701, %v712
        %v715 = vmul.f32 %v702, %v712
        %v716 = vmul.f32 %v703, %v712
        %v717 = vmul.f32 %v704, %v712
        %v718 = vmul.f32 %v705, %v712
        %v719 = vmul.f32 %v706, %v712
        %v720 = vmul.f32 %v707, %v712
        %v721 = vadd.f32 %v692, %v713
        %v722 = vadd.f32 %v693, %v714
        %v723 = vadd.f32 %v694, %v715
        %v724 = vadd.f32 %v695, %v716
        %v725 = vadd.f32 %v696, %v717
        %v726 = vadd.f32 %v697, %v718
        %v727 = vadd.f32 %v698, %v719
        %v728 = vadd.f32 %v699, %v720
        %v729 = vld [vmem:[%s296] sm:$0xff]
        %v730 = vld [vmem:[%s296 + $0x8] sm:$0xff]
        %v731 = vld [vmem:[%s296 + $0x10] sm:$0xff]
        %v732 = vld [vmem:[%s296 + $0x18] sm:$0xff]
        %v733 = vld [vmem:[%s296 + $0x20] sm:$0xff]
        %v734 = vld [vmem:[%s296 + $0x28] sm:$0xff]
        %v735 = vld [vmem:[%s296 + $0x30] sm:$0xff]
        %v736 = vld [vmem:[%s296 + $0x38] sm:$0xff]
        %v737 = vld [vmem:[#allocation6 + $0xe] sm:$0x1]
        %v738 = vlaneseq
        %v739 = vshrl.u32 %v738, 7
        %v740 = vsub.s32 0, %v739
        %v741 = vrot.slane %v737, %v740
        %v742 = vmul.f32 %v729, %v741
        %v743 = vmul.f32 %v730, %v741
        %v744 = vmul.f32 %v731, %v741
        %v745 = vmul.f32 %v732, %v741
        %v746 = vmul.f32 %v733, %v741
        %v747 = vmul.f32 %v734, %v741
        %v748 = vmul.f32 %v735, %v741
        %v749 = vmul.f32 %v736, %v741
        %v750 = vadd.f32 %v721, %v742
        %v751 = vadd.f32 %v722, %v743
        %v752 = vadd.f32 %v723, %v744
        %v753 = vadd.f32 %v724, %v745
        %v754 = vadd.f32 %v725, %v746
        %v755 = vadd.f32 %v726, %v747
        %v756 = vadd.f32 %v727, %v748
        %v757 = vadd.f32 %v728, %v749
        %s758 = scalar_lea.vmem [#allocation2], 24
        %v759 = vld [vmem:[%s758] sm:$0xff]
        %v760 = vld [vmem:[%s758 + $0x8] sm:$0xff]
        %v761 = vld [vmem:[%s758 + $0x10] sm:$0xff]
        %v762 = vld [vmem:[%s758 + $0x18] sm:$0xff]
        %v763 = vld [vmem:[%s758 + $0x20] sm:$0xff]
        %v764 = vld [vmem:[%s758 + $0x28] sm:$0xff]
        %v765 = vld [vmem:[%s758 + $0x30] sm:$0xff]
        %v766 = vld [vmem:[%s758 + $0x38] sm:$0xff]
        %v767 = vld [vmem:[#allocation6 + $0xf] sm:$0x1]
        %v768 = vlaneseq
        %v769 = vshrl.u32 %v768, 7
        %v770 = vsub.s32 0, %v769
        %v771 = vrot.slane %v767, %v770
        %v772 = vmul.f32 %v759, %v771
        %v773 = vmul.f32 %v760, %v771
        %v774 = vmul.f32 %v761, %v771
        %v775 = vmul.f32 %v762, %v771
        %v776 = vmul.f32 %v763, %v771
        %v777 = vmul.f32 %v764, %v771
        %v778 = vmul.f32 %v765, %v771
        %v779 = vmul.f32 %v766, %v771
        %v780 = vadd.f32 %v750, %v772
        %v781 = vadd.f32 %v751, %v773
        %v782 = vadd.f32 %v752, %v774
        %v783 = vadd.f32 %v753, %v775
        %v784 = vadd.f32 %v754, %v776
        %v785 = vadd.f32 %v755, %v777
        %v786 = vadd.f32 %v756, %v778
        %v787 = vadd.f32 %v757, %v779
        %s788 = scalar_lea.vmem [#allocation2], 120
        %v789 = vld [vmem:[%s788] sm:$0xff]
        %v790 = vld [vmem:[%s788 + $0x8] sm:$0xff]
        %v791 = vld [vmem:[%s788 + $0x10] sm:$0xff]
        %v792 = vld [vmem:[%s788 + $0x18] sm:$0xff]
        %v793 = vld [vmem:[%s788 + $0x20] sm:$0xff]
        %v794 = vld [vmem:[%s788 + $0x28] sm:$0xff]
        %v795 = vld [vmem:[%s788 + $0x30] sm:$0xff]
        %v796 = vld [vmem:[%s788 + $0x38] sm:$0xff]
        %v797 = vld [vmem:[#allocation6 + $0x10] sm:$0x1]
        %v798 = vlaneseq
        %v799 = vshrl.u32 %v798, 7
        %v800 = vsub.s32 0, %v799
        %v801 = vrot.slane %v797, %v800
        %v802 = vmul.f32 %v789, %v801
        %v803 = vmul.f32 %v790, %v801
        %v804 = vmul.f32 %v791, %v801
        %v805 = vmul.f32 %v792, %v801
        %v806 = vmul.f32 %v793, %v801
        %v807 = vmul.f32 %v794, %v801
        %v808 = vmul.f32 %v795, %v801
        %v809 = vmul.f32 %v796, %v801
        %v810 = vadd.f32 %v780, %v802
        %v811 = vadd.f32 %v781, %v803
        %v812 = vadd.f32 %v782, %v804
        %v813 = vadd.f32 %v783, %v805
        %v814 = vadd.f32 %v784, %v806
        %v815 = vadd.f32 %v785, %v807
        %v816 = vadd.f32 %v786, %v808
        %v817 = vadd.f32 %v787, %v809
        %s818 = scalar_lea.vmem [#allocation2], 216
        %v819 = vld [vmem:[%s818] sm:$0xff]
        %v820 = vld [vmem:[%s818 + $0x8] sm:$0xff]
        %v821 = vld [vmem:[%s818 + $0x10] sm:$0xff]
        %v822 = vld [vmem:[%s818 + $0x18] sm:$0xff]
        %v823 = vld [vmem:[%s818 + $0x20] sm:$0xff]
        %v824 = vld [vmem:[%s818 + $0x28] sm:$0xff]
        %v825 = vld [vmem:[%s818 + $0x30] sm:$0xff]
        %v826 = vld [vmem:[%s818 + $0x38] sm:$0xff]
        %v827 = vld [vmem:[#allocation6 + $0x11] sm:$0x1]
        %v828 = vlaneseq
        %v829 = vshrl.u32 %v828, 7
        %v830 = vsub.s32 0, %v829
        %v831 = vrot.slane %v827, %v830
        %v832 = vmul.f32 %v819, %v831
        %v833 = vmul.f32 %v820, %v831
        %v834 = vmul.f32 %v821, %v831
        %v835 = vmul.f32 %v822, %v831
        %v836 = vmul.f32 %v823, %v831
        %v837 = vmul.f32 %v824, %v831
        %v838 = vmul.f32 %v825, %v831
        %v839 = vmul.f32 %v826, %v831
        %v840 = vadd.f32 %v810, %v832
        %v841 = vadd.f32 %v811, %v833
        %v842 = vadd.f32 %v812, %v834
        %v843 = vadd.f32 %v813, %v835
        %v844 = vadd.f32 %v814, %v836
        %v845 = vadd.f32 %v815, %v837
        %v846 = vadd.f32 %v816, %v838
        %v847 = vadd.f32 %v817, %v839
        %s848 = scalar_lea.vmem [#allocation2], 312
        %v849 = vld [vmem:[%s848] sm:$0xff]
        %v850 = vld [vmem:[%s848 + $0x8] sm:$0xff]
        %v851 = vld [vmem:[%s848 + $0x10] sm:$0xff]
        %v852 = vld [vmem:[%s848 + $0x18] sm:$0xff]
        %v853 = vld [vmem:[%s848 + $0x20] sm:$0xff]
        %v854 = vld [vmem:[%s848 + $0x28] sm:$0xff]
        %v855 = vld [vmem:[%s848 + $0x30] sm:$0xff]
        %v856 = vld [vmem:[%s848 + $0x38] sm:$0xff]
        %v857 = vld [vmem:[#allocation6 + $0x12] sm:$0x1]
        %v858 = vlaneseq
        %v859 = vshrl.u32 %v858, 7
        %v860 = vsub.s32 0, %v859
        %v861 = vrot.slane %v857, %v860
        %v862 = vmul.f32 %v849, %v861
        %v863 = vmul.f32 %v850, %v861
        %v864 = vmul.f32 %v851, %v861
        %v865 = vmul.f32 %v852, %v861
        %v866 = vmul.f32 %v853, %v861
        %v867 = vmul.f32 %v854, %v861
        %v868 = vmul.f32 %v855, %v861
        %v869 = vmul.f32 %v856, %v861
        %v870 = vadd.f32 %v840, %v862
        %v871 = vadd.f32 %v841, %v863
        %v872 = vadd.f32 %v842, %v864
        %v873 = vadd.f32 %v843, %v865
        %v874 = vadd.f32 %v844, %v866
        %v875 = vadd.f32 %v845, %v867
        %v876 = vadd.f32 %v846, %v868
        %v877 = vadd.f32 %v847, %v869
        %s878 = scalar_lea.vmem [#allocation2], 408
        %v879 = vld [vmem:[%s878] sm:$0xff]
        %v880 = vld [vmem:[%s878 + $0x8] sm:$0xff]
        %v881 = vld [vmem:[%s878 + $0x10] sm:$0xff]
        %v882 = vld [vmem:[%s878 + $0x18] sm:$0xff]
        %v883 = vld [vmem:[%s878 + $0x20] sm:$0xff]
        %v884 = vld [vmem:[%s878 + $0x28] sm:$0xff]
        %v885 = vld [vmem:[%s878 + $0x30] sm:$0xff]
        %v886 = vld [vmem:[%s878 + $0x38] sm:$0xff]
        %v887 = vld [vmem:[#allocation6 + $0x13] sm:$0x1]
        %v888 = vlaneseq
        %v889 = vshrl.u32 %v888, 7
        %v890 = vsub.s32 0, %v889
        %v891 = vrot.slane %v887, %v890
        %v892 = vmul.f32 %v879, %v891
        %v893 = vmul.f32 %v880, %v891
        %v894 = vmul.f32 %v881, %v891
        %v895 = vmul.f32 %v882, %v891
        %v896 = vmul.f32 %v883, %v891
        %v897 = vmul.f32 %v884, %v891
        %v898 = vmul.f32 %v885, %v891
        %v899 = vmul.f32 %v886, %v891
        %v900 = vadd.f32 %v870, %v892
        %v901 = vadd.f32 %v871, %v893
        %v902 = vadd.f32 %v872, %v894
        %v903 = vadd.f32 %v873, %v895
        %v904 = vadd.f32 %v874, %v896
        %v905 = vadd.f32 %v875, %v897
        %v906 = vadd.f32 %v876, %v898
        %v907 = vadd.f32 %v877, %v899
        %s908 = scalar_lea.vmem [#allocation2], 32
        %v909 = vld [vmem:[%s908] sm:$0xff]
        %v910 = vld [vmem:[%s908 + $0x8] sm:$0xff]
        %v911 = vld [vmem:[%s908 + $0x10] sm:$0xff]
        %v912 = vld [vmem:[%s908 + $0x18] sm:$0xff]
        %v913 = vld [vmem:[%s908 + $0x20] sm:$0xff]
        %v914 = vld [vmem:[%s908 + $0x28] sm:$0xff]
        %v915 = vld [vmem:[%s908 + $0x30] sm:$0xff]
        %v916 = vld [vmem:[%s908 + $0x38] sm:$0xff]
        %v917 = vld [vmem:[#allocation6 + $0x14] sm:$0x1]
        %v918 = vlaneseq
        %v919 = vshrl.u32 %v918, 7
        %v920 = vsub.s32 0, %v919
        %v921 = vrot.slane %v917, %v920
        %v922 = vmul.f32 %v909, %v921
        %v923 = vmul.f32 %v910, %v921
        %v924 = vmul.f32 %v911, %v921
        %v925 = vmul.f32 %v912, %v921
        %v926 = vmul.f32 %v913, %v921
        %v927 = vmul.f32 %v914, %v921
        %v928 = vmul.f32 %v915, %v921
        %v929 = vmul.f32 %v916, %v921
        %v930 = vadd.f32 %v900, %v922
        %v931 = vadd.f32 %v901, %v923
        %v932 = vadd.f32 %v902, %v924
        %v933 = vadd.f32 %v903, %v925
        %v934 = vadd.f32 %v904, %v926
        %v935 = vadd.f32 %v905, %v927
        %v936 = vadd.f32 %v906, %v928
        %v937 = vadd.f32 %v907, %v929
        %s938 = scalar_lea.vmem [#allocation2], 128
        %v939 = vld [vmem:[%s938] sm:$0xff]
        %v940 = vld [vmem:[%s938 + $0x8] sm:$0xff]
        %v941 = vld [vmem:[%s938 + $0x10] sm:$0xff]
        %v942 = vld [vmem:[%s938 + $0x18] sm:$0xff]
        %v943 = vld [vmem:[%s938 + $0x20] sm:$0xff]
        %v944 = vld [vmem:[%s938 + $0x28] sm:$0xff]
        %v945 = vld [vmem:[%s938 + $0x30] sm:$0xff]
        %v946 = vld [vmem:[%s938 + $0x38] sm:$0xff]
        %v947 = vld [vmem:[#allocation6 + $0x15] sm:$0x1]
        %v948 = vlaneseq
        %v949 = vshrl.u32 %v948, 7
        %v950 = vsub.s32 0, %v949
        %v951 = vrot.slane %v947, %v950
        %v952 = vmul.f32 %v939, %v951
        %v953 = vmul.f32 %v940, %v951
        %v954 = vmul.f32 %v941, %v951
        %v955 = vmul.f32 %v942, %v951
        %v956 = vmul.f32 %v943, %v951
        %v957 = vmul.f32 %v944, %v951
        %v958 = vmul.f32 %v945, %v951
        %v959 = vmul.f32 %v946, %v951
        %v960 = vadd.f32 %v930, %v952
        %v961 = vadd.f32 %v931, %v953
        %v962 = vadd.f32 %v932, %v954
        %v963 = vadd.f32 %v933, %v955
        %v964 = vadd.f32 %v934, %v956
        %v965 = vadd.f32 %v935, %v957
        %v966 = vadd.f32 %v936, %v958
        %v967 = vadd.f32 %v937, %v959
        %s968 = scalar_lea.vmem [#allocation2], 224
        %v969 = vld [vmem:[%s968] sm:$0xff]
        %v970 = vld [vmem:[%s968 + $0x8] sm:$0xff]
        %v971 = vld [vmem:[%s968 + $0x10] sm:$0xff]
        %v972 = vld [vmem:[%s968 + $0x18] sm:$0xff]
        %v973 = vld [vmem:[%s968 + $0x20] sm:$0xff]
        %v974 = vld [vmem:[%s968 + $0x28] sm:$0xff]
        %v975 = vld [vmem:[%s968 + $0x30] sm:$0xff]
        %v976 = vld [vmem:[%s968 + $0x38] sm:$0xff]
        %v977 = vld [vmem:[#allocation6 + $0x16] sm:$0x1]
        %v978 = vlaneseq
        %v979 = vshrl.u32 %v978, 7
        %v980 = vsub.s32 0, %v979
        %v981 = vrot.slane %v977, %v980
        %v982 = vmul.f32 %v969, %v981
        %v983 = vmul.f32 %v970, %v981
        %v984 = vmul.f32 %v971, %v981
        %v985 = vmul.f32 %v972, %v981
        %v986 = vmul.f32 %v973, %v981
        %v987 = vmul.f32 %v974, %v981
        %v988 = vmul.f32 %v975, %v981
        %v989 = vmul.f32 %v976, %v981
        %v990 = vadd.f32 %v960, %v982
        %v991 = vadd.f32 %v961, %v983
        %v992 = vadd.f32 %v962, %v984
        %v993 = vadd.f32 %v963, %v985
        %v994 = vadd.f32 %v964, %v986
        %v995 = vadd.f32 %v965, %v987
        %v996 = vadd.f32 %v966, %v988
        %v997 = vadd.f32 %v967, %v989
        %s998 = scalar_lea.vmem [#allocation2], 320
        %v999 = vld [vmem:[%s998] sm:$0xff]
        %v1000 = vld [vmem:[%s998 + $0x8] sm:$0xff]
        %v1001 = vld [vmem:[%s998 + $0x10] sm:$0xff]
        %v1002 = vld [vmem:[%s998 + $0x18] sm:$0xff]
        %v1003 = vld [vmem:[%s998 + $0x20] sm:$0xff]
        %v1004 = vld [vmem:[%s998 + $0x28] sm:$0xff]
        %v1005 = vld [vmem:[%s998 + $0x30] sm:$0xff]
        %v1006 = vld [vmem:[%s998 + $0x38] sm:$0xff]
        %v1007 = vld [vmem:[#allocation6 + $0x17] sm:$0x1]
        %v1008 = vlaneseq
        %v1009 = vshrl.u32 %v1008, 7
        %v1010 = vsub.s32 0, %v1009
        %v1011 = vrot.slane %v1007, %v1010
        %v1012 = vmul.f32 %v999, %v1011
        %v1013 = vmul.f32 %v1000, %v1011
        %v1014 = vmul.f32 %v1001, %v1011
        %v1015 = vmul.f32 %v1002, %v1011
        %v1016 = vmul.f32 %v1003, %v1011
        %v1017 = vmul.f32 %v1004, %v1011
        %v1018 = vmul.f32 %v1005, %v1011
        %v1019 = vmul.f32 %v1006, %v1011
        %v1020 = vadd.f32 %v990, %v1012
        %v1021 = vadd.f32 %v991, %v1013
        %v1022 = vadd.f32 %v992, %v1014
        %v1023 = vadd.f32 %v993, %v1015
        %v1024 = vadd.f32 %v994, %v1016
        %v1025 = vadd.f32 %v995, %v1017
        %v1026 = vadd.f32 %v996, %v1018
        %v1027 = vadd.f32 %v997, %v1019
        %s1028 = scalar_lea.vmem [#allocation2], 416
        %v1029 = vld [vmem:[%s1028] sm:$0xff]
        %v1030 = vld [vmem:[%s1028 + $0x8] sm:$0xff]
        %v1031 = vld [vmem:[%s1028 + $0x10] sm:$0xff]
        %v1032 = vld [vmem:[%s1028 + $0x18] sm:$0xff]
        %v1033 = vld [vmem:[%s1028 + $0x20] sm:$0xff]
        %v1034 = vld [vmem:[%s1028 + $0x28] sm:$0xff]
        %v1035 = vld [vmem:[%s1028 + $0x30] sm:$0xff]
        %v1036 = vld [vmem:[%s1028 + $0x38] sm:$0xff]
        %v1037 = vld [vmem:[#allocation6 + $0x18] sm:$0x1]
        %v1038 = vlaneseq
        %v1039 = vshrl.u32 %v1038, 7
        %v1040 = vsub.s32 0, %v1039
        %v1041 = vrot.slane %v1037, %v1040
        %v1042 = vmul.f32 %v1029, %v1041
        %v1043 = vmul.f32 %v1030, %v1041
        %v1044 = vmul.f32 %v1031, %v1041
        %v1045 = vmul.f32 %v1032, %v1041
        %v1046 = vmul.f32 %v1033, %v1041
        %v1047 = vmul.f32 %v1034, %v1041
        %v1048 = vmul.f32 %v1035, %v1041
        %v1049 = vmul.f32 %v1036, %v1041
        %v1050 = vadd.f32 %v1020, %v1042
        %v1051 = vadd.f32 %v1021, %v1043
        %v1052 = vadd.f32 %v1022, %v1044
        %v1053 = vadd.f32 %v1023, %v1045
        %v1054 = vadd.f32 %v1024, %v1046
        %v1055 = vadd.f32 %v1025, %v1047
        %v1056 = vadd.f32 %v1026, %v1048
        %v1057 = vadd.f32 %v1027, %v1049
        %1058 = vst.msk [vmem:[%s200] sm:$0xff] %vm209, %v1050
        %1059 = vst.msk [vmem:[%s200 + $0x8] sm:$0xff] %vm209, %v1051
        %1060 = vst.msk [vmem:[%s200 + $0x10] sm:$0xff] %vm209, %v1052
        %1061 = vst.msk [vmem:[%s200 + $0x18] sm:$0xff] %vm209, %v1053
        %1062 = vst.msk [vmem:[%s200 + $0x20] sm:$0xff] %vm209, %v1054
        %1063 = vst.msk [vmem:[%s200 + $0x28] sm:$0xff] %vm209, %v1055
        %1064 = vst.msk [vmem:[%s200 + $0x30] sm:$0xff] %vm209, %v1056
        %1065 = vst.msk [vmem:[%s200 + $0x38] sm:$0xff] %vm209, %v1057
        %s1066 = sand.u32 %s96, 1
        %s1067 = scalar_lea.sflag [#allocation5], %s1066
        %s1068 = sand.u32 %s96, 1
        %s1069 = smul.addr %s1068, 64
        %s1070 = scalar_lea.vmem [#allocation8], %s1069
        // Predicated region
        $region37: #{tpu_custom_call.1} parent=27 // pred_check
          %p1071 = pneg %p106
        $region38: #{tpu_custom_call.1} parent=27 // pred_check_branch
          %1073 = sbr.rel (%p1071) target = $region40
        $region39: #{tpu_custom_call.1} parent=27 // pred_region
          %s1075 = ssub.s32 1024, 1024
          %1076 = vsyncadd %s1067, %s1075
          %s1077 = smul.addr %s24, 8
          %s1078 = sadd.s32 %s25, %s1077
          %s1079 = smul.addr %s1078, 128
          %s1080 = scalar_lea.hbm %s2, %s1079
          %s1081 = sshll.u32 %s1070, 4
          %s1082 = int_to_ptr.vmem [resolvable:$true] %s1081
          %1087 = dma.vmem_to_hbm [thread:$0]  %s1082, 1024, %s1080, %s1067, 128, 128, 8
        $region40: #{tpu_custom_call.1} parent=27 // pred_fallthru
          _
      $region28: #{tpu_custom_call.1} parent=5 // pred_fallthru
        _
      %p1088 = scmp.le.s32.totalorder 2, %s15
      // Predicated region
      $region41: #{tpu_custom_call.1} parent=5 // pred_check
        %p1089 = pneg %p1088
      $region42: #{tpu_custom_call.1} parent=5 // pred_check_branch
        %1091 = sbr.rel (%p1089) target = $region44
      $region43: #{tpu_custom_call.1} parent=5 // pred_region
        %s1092 = ssub.s32 %s15, 2
        // Predicated region
        $region45: #{tpu_custom_call.1} parent=43 // pred_check
          %p1093 = pneg %p112
        $region46: #{tpu_custom_call.1} parent=43 // pred_check_branch
          %1095 = sbr.rel (%p1093) target = $region48
        $region47: #{tpu_custom_call.1} parent=43 // pred_region
          %s1096 = sand.u32 %s97, 1
          %s1097 = scalar_lea.sflag [#allocation5], %s1096
          %s1098 = sand.u32 %s97, 1
          %s1099 = smul.addr %s1098, 64
          %s1100 = scalar_lea.vmem [#allocation8], %s1099
          %1101 = dma.done %s1097, 1024
        $region48: #{tpu_custom_call.1} parent=43 // pred_fallthru
          _
      $region44: #{tpu_custom_call.1} parent=5 // pred_fallthru
        _
    $region6: #{tpu_custom_call.1} parent=1 // loop_footer
      %s19 = sadd.s32 1, %s15
    $region7: #{tpu_custom_call.1} parent=1 // loop_footer_branch
      %14 = sbr.rel target = $region3
    $region8: #{tpu_custom_call.1} parent=1 // loop_exit
      _
    %1102 = vsyncpa [#allocation4], 1
    %s1103 = scalar_lea.sflag [#allocation4], 1
    %1104 = vsyncpa %s1103, 1
    %1105 = vsyncpa [#allocation7], 1
    %1106 = vsyncpa [#allocation5], 1
    %s1107 = scalar_lea.sflag [#allocation5], 1
    %1108 = vsyncpa %s1107, 1

</llo_original>
